<compile_context>
chip_gen: v7x
topology: tpu7x:2x2x1
jax: 0.10.0
libtpu: 0.0.40
codegen_flags: <defaults>
</compile_context>

<pallas_src>
import jax
import jax.numpy as jnp
from jax.experimental import pallas as pl
from jax.experimental.pallas import tpu as pltpu

LANES = 128


def _gelu(x):
    # tanh-approx GELU: lowers to the EUP (its own bundle slot) instead of a long
    # erf polynomial on the saturated VALU slots.  Diverges from torch.nn.GELU()'s
    # exact erf by ~1e-3, well inside this module's test tolerance.
    return jax.nn.gelu(x, approximate=True)


def _tree_sum(terms):
    terms = list(terms)
    while len(terms) > 1:
        nxt = [terms[i] + terms[i + 1] for i in range(0, len(terms) - 1, 2)]
        if len(terms) % 2:
            nxt.append(terms[-1])
        terms = nxt
    return terms[0]


def _round_up(x, m):
    return ((x + m - 1) // m) * m


# ----------------------------------------------------------------------------- #
# Kernel
# ----------------------------------------------------------------------------- #
def make_gin_kernel(num_layers, S, H, tile_g):
    P = LANES // H            # nodes packed per 128-lane row
    R = S // P                # packed rows per subgraph slot
    bf16 = jnp.bfloat16
    f32 = jnp.float32

    def a_idx(r, rp, d):      # coefficient-row index: dest row r, src row rp, shift d
        return r * (R * P) + rp * P + d

    def kernel(*refs):
        a_ref, nm_ref = refs[0], refs[1]          # (R*R*P, TG, 128) bf16 / (TG, R*128) f32
        w_refs = refs[2:2 + 4 * num_layers]
        wfc0_ref = refs[2 + 4 * num_layers]
        bfc0_ref = refs[3 + 4 * num_layers]
        emb_ref = refs[-1]

        TG = tile_g
        nm = nm_ref[...]
        nm_rows = [nm[:, r * LANES:(r + 1) * LANES] for r in range(R)]

        # ---- GIN layer 0 (in_dim == 1; x == node_mask; A pre-masked) -----------
        # (A + I) @ ones_valid == row-degree + node_mask.  Degree of packed row r
        # is the sum of its R*P coefficient rows (bf16 0/1 sums are exact).
        wa0 = w_refs[0][...]                       # (1, 128) f32, tiled Px
        ba0 = w_refs[1][...]
        wb0 = w_refs[2][...]                       # (128, 128) bf16 block-diagonal
        bb0 = w_refs[3][...]
        h_rows = []
        for r in range(R):
            deg = _tree_sum([a_ref[a_idx(r, rp, d)]
                             for rp in range(R) for d in range(P)]).astype(f32)
            agg = deg + nm_rows[r]                 # (TG, 128)
            h_rows.append(_gelu(agg * wa0 + ba0))
        h = jnp.concatenate(h_rows, axis=0)        # (R*TG, 128), r-major
        x = _gelu(jnp.dot(h.astype(bf16), wb0,
                          preferred_element_type=f32) + bb0)      # MXU, full lanes

        # ---- GIN layers 1 .. L-1 ------------------------------------------------
        for l in range(1, num_layers):
            wa = w_refs[4 * l + 0][...]
            ba = w_refs[4 * l + 1][...]
            wb = w_refs[4 * l + 2][...]
            bb = w_refs[4 * l + 3][...]
            x_rows = [x[r * TG:(r + 1) * TG] for r in range(R)]
            # lane-group rotations of every source row (XLU slot, shared by dest rows)
            rolled = [[x_rows[rp] if d == 0 else
                       pltpu.roll(x_rows[rp], shift=d * H, axis=1)
                       for d in range(P)] for rp in range(R)]
            agg_rows = []
            for r in range(R):
                parts = [a_ref[a_idx(r, rp, d)] * rolled[rp][d]
                         for rp in range(R) for d in range(P)]
                # eps = 0  ->  (1 + eps) * x = x ; balanced tree keeps VALU slots full
                agg_rows.append(x_rows[r] + _tree_sum(parts))
            agg = jnp.concatenate(agg_rows, axis=0)
            h = _gelu(jnp.dot(agg.astype(bf16), wa, preferred_element_type=f32) + ba)
            x = _gelu(jnp.dot(h.astype(bf16), wb, preferred_element_type=f32) + bb)

        # ---- fc0 + GELU ----------------------------------------------------------
        y = _gelu(jnp.dot(x.astype(bf16), wfc0_ref[...],
                          preferred_element_type=f32) + bfc0_ref[...])

        # ---- masked global_add_pool -> lane-dense (TG, 128) output --------------
        s = _tree_sum([y[r * TG:(r + 1) * TG] * nm_rows[r] for r in range(R)])
        shift = H
        while shift < LANES:                       # fold the P lane groups (XLU rolls)
            s = s + pltpu.roll(s, shift=shift, axis=1)
            shift *= 2
        emb_ref[...] = s                           # every lane group holds the pooled sum
    return kernel


# ----------------------------------------------------------------------------- #
# Host-side packing helpers
# ----------------------------------------------------------------------------- #
def pack_adjacency(A, H, P):
    """A: (G, S, S) -> (R*R*P, G, P*H) bf16 coefficient rows.

    Row (r, rp, d), lane group k holds A[:, P*r + k, P*rp + ((k - d) % P)],
    broadcast over the H lanes of its group, so that it multiplies
    roll(x_row_rp, d*H) elementwise in the kernel."""
    G, S, _ = A.shape
    R = S // P
    rows = []
    for r in range(R):
        for rp in range(R):
            for d in range(P):
                cols = jnp.stack([A[:, P * r + k, P * rp + ((k - d) % P)]
                                  for k in range(P)], axis=-1)        # (G, P)
                rows.append(jnp.repeat(cols, H, axis=-1))             # (G, P*H)
    return jnp.stack(rows, axis=0).astype(jnp.bfloat16)               # (R*R*P, G, 128)


def pack_mask(nmask, H, P):
    """(G, S) -> (G, R*128) f32, node mask broadcast over its lane group."""
    G, S = nmask.shape
    R = S // P
    m = jnp.repeat(nmask.reshape(G, R, P), H, axis=-1)                # (G, R, 128)
    return m.reshape(G, R * P * H).astype(jnp.float32)


def _block_diag(W, P):
    H = W.shape[0]
    out = jnp.zeros((P * H, P * H), jnp.float32)
    for k in range(P):
        out = out.at[k * H:(k + 1) * H, k * H:(k + 1) * H].set(W)
    return out.astype(jnp.bfloat16)


def _tile_row(b, P):
    return jnp.tile(b.reshape(1, -1), (1, P)).astype(jnp.float32)


def _pick_tile_g(G, R, P, vmem_limit_bytes):
    """Largest slot-tile whose *padded, lane-dense* footprint fits the VMEM budget."""
    n_coef = R * R * P
    per_slot = (2 * n_coef * LANES * 2       # A coefficient tile (bf16), double-buffered
                + 2 * R * LANES * 4          # node-mask tile (f32), double-buffered
                + 2 * LANES * 4              # output tile (f32), double-buffered
                + 16 * R * LANES * 4)        # ~16 simultaneously-live f32 activation copies
    budget = vmem_limit_bytes - (8 << 20)    # headroom: weights + compiler scratch
    t = max(16, budget // per_slot)
    t = min(t, 2048)
    t = min(t, max(G // 8, 16))              # keep >= ~8 grid steps (pipeline + 2 v7x TCs)
    return int(max(16, (t // 16) * 16))      # align for bf16 (16,128) sublane tiling


# ----------------------------------------------------------------------------- #
# Forward wrapper
# ----------------------------------------------------------------------------- #
def local_gnn_k4_forward(A, node_mask, params, *, num_layers, hidden, tile_g=None):
    """A: (G, S, S) dense 0/1 adjacency (pre-masked for invalid nodes / padded
    subgraph slots); node_mask: (G, S).  Returns (emb (G, H), res (G,))."""
    G, S, _ = A.shape
    H = hidden
    assert LANES % H == 0, "hidden must divide 128 for lane packing"
    P = LANES // H
    assert P & (P - 1) == 0, "128 // hidden must be a power of two"
    assert S % P == 0, "max subgraph nodes must be a multiple of 128 // hidden"
    R = S // P

    # generation-aware VMEM budget (v7x: 64 MiB physical -> ~40 MiB; v5e/v6e: ~80 MiB)
    try:
        info = pltpu.get_tpu_info()
        vmem_cap = int(getattr(info, "vmem_capacity_bytes", 64 << 20))
    except Exception:
        vmem_cap = 64 << 20
    vmem_limit = min(vmem_cap * 5 // 8, 96 << 20)

    if tile_g is None:
        tile_g = _pick_tile_g(G, R, P, vmem_limit)
    Gp = _round_up(G, tile_g)

    # --- host-side packing ----------------------------------------------------
    A_packed = pack_adjacency(A, H, P)                 # (n_coef, G, 128) bf16
    nm_packed = pack_mask(node_mask, H, P)             # (G, R*128) f32
    if Gp != G:
        A_packed = jnp.pad(A_packed, ((0, 0), (0, Gp - G), (0, 0)))
        nm_packed = jnp.pad(nm_packed, ((0, Gp - G), (0, 0)))
    n_coef = R * R * P

    # weights: block-diagonal 128x128 bf16, biases tiled Px (pre-cast on host)
    flat_params = []
    for l, (wa, ba, wb, bb) in enumerate(params['gin']):
        if l == 0:
            flat_params += [_tile_row(wa, P), _tile_row(ba, P),
                            _block_diag(wb, P), _tile_row(bb, P)]
        else:
            flat_params += [_block_diag(wa, P), _tile_row(ba, P),
                            _block_diag(wb, P), _tile_row(bb, P)]
    flat_params += [_block_diag(params['fc0_w'], P), _tile_row(params['fc0_b'], P)]

    in_specs = [
        pl.BlockSpec((n_coef, tile_g, LANES), lambda g: (0, g, 0)),
        pl.BlockSpec((tile_g, R * LANES), lambda g: (g, 0)),
    ] + [pl.BlockSpec(p.shape, lambda g, _nd=p.ndim: (0,) * _nd) for p in flat_params]

    grid = (Gp // tile_g,)

    # advisory cost estimate (per-packed-row matmuls + aggregation + GELU EUP ops)
    n_mm = 2 * num_layers
    matmul_flops = n_mm * (Gp * R) * 2 * LANES * LANES
    agg_flops = ((num_layers - 1) * Gp * n_coef * LANES * 2   # aggregation madds
                 + Gp * n_coef * LANES)                        # layer-0 degree sums
    transcendentals = (2 * num_layers + 1) * Gp * R * LANES
    bytes_accessed = (A_packed.size * 2 + nm_packed.size * 4 + Gp * LANES * 4
                      + sum(int(p.size) * p.dtype.itemsize for p in flat_params))

    emb_full = pl.pallas_call(
        make_gin_kernel(num_layers, S, H, tile_g),
        grid=grid,
        in_specs=in_specs,
        out_specs=pl.BlockSpec((tile_g, LANES), lambda g: (g, 0)),
        out_shape=jax.ShapeDtypeStruct((Gp, LANES), jnp.float32),
        compiler_params=pltpu.CompilerParams(
            dimension_semantics=("parallel",),
            vmem_limit_bytes=int(vmem_limit)),
        cost_estimate=pl.CostEstimate(
            flops=int(matmul_flops + agg_flops),
            transcendentals=int(transcendentals),
            bytes_accessed=int(bytes_accessed)),
    )(A_packed, nm_packed, *flat_params)

    emb = emb_full[:G, :H]                  # every lane group holds the pooled sum
    # fc1 applied to every int_emb row (including zero-padded ones), as in torch.
    res = (emb @ params['fc1_w'] + params['fc1_b'])[:, 0]
    return emb, res


# ----------------------------------------------------------------------------- #
# Params / synthetic data / pure-JAX reference
# ----------------------------------------------------------------------------- #
def init_params(key, num_layers, hidden):
    keys = jax.random.split(key, 4 * num_layers + 4)
    idx = 0
    gin = []
    in_dim = 1
    for _ in range(num_layers):
        wa = jax.random.normal(keys[idx], (in_dim, hidden), jnp.float32) * 0.2; idx += 1
        ba = jax.random.normal(keys[idx], (1, hidden), jnp.float32) * 0.1; idx += 1
        wb = jax.random.normal(keys[idx], (hidden, hidden), jnp.float32) * 0.2; idx += 1
        bb = jax.random.normal(keys[idx], (1, hidden), jnp.float32) * 0.1; idx += 1
        gin.append((wa, ba, wb, bb))
        in_dim = hidden
    fc0_w = jax.random.normal(keys[idx], (hidden, hidden), jnp.float32) * 0.2; idx += 1
    fc0_b = jax.random.normal(keys[idx], (1, hidden), jnp.float32) * 0.1; idx += 1
    fc1_w = jax.random.normal(keys[idx], (hidden, 1), jnp.float32) * 0.2; idx += 1
    fc1_b = jax.random.normal(keys[idx], (1, 1), jnp.float32) * 0.1
    return dict(gin=gin, fc0_w=fc0_w, fc0_b=fc0_b, fc1_w=fc1_w, fc1_b=fc1_b)


def make_synthetic_graphs(key, B, M, S, p_edge=0.4):
    k1, k2, k3 = jax.random.split(key, 3)
    n_nodes = jax.random.randint(k1, (B, M), 2, S + 1)        # nodes per subgraph
    node_ids = jnp.arange(S)
    nmask = (node_ids[None, None, :] < n_nodes[:, :, None]).astype(jnp.float32)
    raw = jax.random.bernoulli(k2, p_edge, (B, M, S, S)).astype(jnp.float32)
    upper = jnp.triu(raw, k=1)
    A = upper + jnp.transpose(upper, (0, 1, 3, 2))            # undirected edges
    A = A * nmask[:, :, :, None] * nmask[:, :, None, :]
    m_valid = jax.random.randint(k3, (B,), 1, M + 1)          # >= 1 subgraph per graph
    smask = (jnp.arange(M)[None, :] < m_valid[:, None]).astype(jnp.float32)
    A = A * smask[:, :, None, None]
    nmask = nmask * smask[:, :, None]   # subgraph validity folded into node_mask
    return A, nmask


def reference_forward(A, nmask, params):
    # pure-JAX reference with the same bf16-operand / f32-accumulate matmul math
    G, S, _ = A.shape
    H = params['fc0_w'].shape[0]
    bf16 = jnp.bfloat16

    def mm(a, b):
        return jnp.dot(a.astype(bf16), b.astype(bf16),
                       preferred_element_type=jnp.float32)

    x = nmask[:, :, None]                                     # ones on valid nodes
    for l, (wa, ba, wb, bb) in enumerate(params['gin']):
        agg = jnp.einsum('gij,gjf->gif', A, x) + x            # GIN, eps = 0
        if l == 0:
            h = _gelu(agg * wa[0][None, None, :] + ba)        # in_dim == 1
        else:
            h = _gelu(mm(agg.reshape(G * S, H), wa).reshape(G, S, H) + ba)
        x = _gelu(mm(h.reshape(G * S, H), wb).reshape(G, S, H) + bb)
    y = _gelu(mm(x.reshape(G * S, H), params['fc0_w']).reshape(G, S, H)
              + params['fc0_b'])
    emb = jnp.sum(y * nmask[:, :, None], axis=1)
    res = (emb @ params['fc1_w'] + params['fc1_b'])[:, 0]
    return emb, res


if __name__ == "__main__":
    # batch=4 graphs, up to 64 subgraphs each, 8 nodes per subgraph, hidden=32
    B, M, S, H, L = 4, 64, 8, 32, 2
    key = jax.random.PRNGKey(0)
    kp, kd = jax.random.split(key)

    params = init_params(kp, L, H)
    A, nmask = make_synthetic_graphs(kd, B, M, S)

    A_f = A.reshape(B * M, S, S)
    n_f = nmask.reshape(B * M, S)

    emb, res = local_gnn_k4_forward(A_f, n_f, params, num_layers=L, hidden=H)
    emb = jax.block_until_ready(emb)
    res = jax.block_until_ready(res)

    int_emb = emb.reshape(B, M, H)      # == int_emb in the PyTorch reference
    out_res = res.reshape(B, M)         # == torch.squeeze(fc1(int_emb), dim=-1)

    emb_ref, res_ref = reference_forward(A_f, n_f, params)
    assert jnp.allclose(emb, emb_ref, atol=2e-2, rtol=2e-2)
    assert jnp.allclose(res, res_ref, atol=2e-2, rtol=2e-2)

    print("KERNEL_OK")
</pallas_src>

<mosaic_0001>
module attributes {stable_mosaic.version = 11 : i64} {
  func.func @kernel(%arg0: i32, %arg1: memref<16x32x128xbf16, #tpu.memory_space<vmem>>, %arg2: memref<32x256xf32, #tpu.memory_space<vmem>>, %arg3: memref<1x128xf32, #tpu.memory_space<vmem>>, %arg4: memref<1x128xf32, #tpu.memory_space<vmem>>, %arg5: memref<128x128xbf16, #tpu.memory_space<vmem>>, %arg6: memref<1x128xf32, #tpu.memory_space<vmem>>, %arg7: memref<128x128xbf16, #tpu.memory_space<vmem>>, %arg8: memref<1x128xf32, #tpu.memory_space<vmem>>, %arg9: memref<128x128xbf16, #tpu.memory_space<vmem>>, %arg10: memref<1x128xf32, #tpu.memory_space<vmem>>, %arg11: memref<128x128xbf16, #tpu.memory_space<vmem>>, %arg12: memref<1x128xf32, #tpu.memory_space<vmem>>, %arg13: memref<32x128xf32, #tpu.memory_space<vmem>>) attributes {dimension_semantics = [#tpu.dimension_semantics<parallel>], iteration_bounds = array<i64: 8>, scalar_prefetch = 0 : i64, scratch_operands = 0 : i64, tpu.core_type = #tpu.core_type<tc>, window_params = [{transform_indices = @transform_0, window_bounds = array<i64: 16, 32, 128>}, {transform_indices = @transform_1, window_bounds = array<i64: 32, 256>}, {pipeline_mode = #tpu.pipeline_mode<synchronous>, transform_indices = @transform_2, window_bounds = array<i64: 1, 128>}, {pipeline_mode = #tpu.pipeline_mode<synchronous>, transform_indices = @transform_3, window_bounds = array<i64: 1, 128>}, {pipeline_mode = #tpu.pipeline_mode<synchronous>, transform_indices = @transform_4, window_bounds = array<i64: 128, 128>}, {pipeline_mode = #tpu.pipeline_mode<synchronous>, transform_indices = @transform_5, window_bounds = array<i64: 1, 128>}, {pipeline_mode = #tpu.pipeline_mode<synchronous>, transform_indices = @transform_6, window_bounds = array<i64: 128, 128>}, {pipeline_mode = #tpu.pipeline_mode<synchronous>, transform_indices = @transform_7, window_bounds = array<i64: 1, 128>}, {pipeline_mode = #tpu.pipeline_mode<synchronous>, transform_indices = @transform_8, window_bounds = array<i64: 128, 128>}, {pipeline_mode = #tpu.pipeline_mode<synchronous>, transform_indices = @transform_9, window_bounds = array<i64: 1, 128>}, {pipeline_mode = #tpu.pipeline_mode<synchronous>, transform_indices = @transform_10, window_bounds = array<i64: 128, 128>}, {pipeline_mode = #tpu.pipeline_mode<synchronous>, transform_indices = @transform_11, window_bounds = array<i64: 1, 128>}, {transform_indices = @transform_12, window_bounds = array<i64: 32, 128>}]} {
    %c0 = arith.constant 0 : index
    %c0_0 = arith.constant 0 : index
    %0 = vector.load %arg2[%c0, %c0_0] : memref<32x256xf32, #tpu.memory_space<vmem>>, vector<32x256xf32>
    %1 = vector.extract_strided_slice %0 {offsets = [0, 0], sizes = [32, 128], strides = [1, 1]} : vector<32x256xf32> to vector<32x128xf32>
    %2 = vector.extract_strided_slice %0 {offsets = [0, 128], sizes = [32, 128], strides = [1, 1]} : vector<32x256xf32> to vector<32x128xf32>
    %c0_1 = arith.constant 0 : index
    %c0_2 = arith.constant 0 : index
    %3 = vector.load %arg3[%c0_1, %c0_2] : memref<1x128xf32, #tpu.memory_space<vmem>>, vector<1x128xf32>
    %c0_3 = arith.constant 0 : index
    %c0_4 = arith.constant 0 : index
    %4 = vector.load %arg4[%c0_3, %c0_4] : memref<1x128xf32, #tpu.memory_space<vmem>>, vector<1x128xf32>
    %c0_5 = arith.constant 0 : index
    %c0_6 = arith.constant 0 : index
    %5 = vector.load %arg5[%c0_5, %c0_6] : memref<128x128xbf16, #tpu.memory_space<vmem>>, vector<128x128xbf16>
    %c0_7 = arith.constant 0 : index
    %c0_8 = arith.constant 0 : index
    %6 = vector.load %arg6[%c0_7, %c0_8] : memref<1x128xf32, #tpu.memory_space<vmem>>, vector<1x128xf32>
    %c0_9 = arith.constant 0 : index
    %c0_10 = arith.constant 0 : index
    %c0_11 = arith.constant 0 : index
    %7 = vector.load %arg1[%c0_9, %c0_10, %c0_11] : memref<16x32x128xbf16, #tpu.memory_space<vmem>>, vector<1x32x128xbf16>
    %8 = vector.shape_cast %7 : vector<1x32x128xbf16> to vector<32x128xbf16>
    %c1 = arith.constant 1 : index
    %c0_12 = arith.constant 0 : index
    %c0_13 = arith.constant 0 : index
    %9 = vector.load %arg1[%c1, %c0_12, %c0_13] : memref<16x32x128xbf16, #tpu.memory_space<vmem>>, vector<1x32x128xbf16>
    %10 = vector.shape_cast %9 : vector<1x32x128xbf16> to vector<32x128xbf16>
    %c2 = arith.constant 2 : index
    %c0_14 = arith.constant 0 : index
    %c0_15 = arith.constant 0 : index
    %11 = vector.load %arg1[%c2, %c0_14, %c0_15] : memref<16x32x128xbf16, #tpu.memory_space<vmem>>, vector<1x32x128xbf16>
    %12 = vector.shape_cast %11 : vector<1x32x128xbf16> to vector<32x128xbf16>
    %c3 = arith.constant 3 : index
    %c0_16 = arith.constant 0 : index
    %c0_17 = arith.constant 0 : index
    %13 = vector.load %arg1[%c3, %c0_16, %c0_17] : memref<16x32x128xbf16, #tpu.memory_space<vmem>>, vector<1x32x128xbf16>
    %14 = vector.shape_cast %13 : vector<1x32x128xbf16> to vector<32x128xbf16>
    %c4 = arith.constant 4 : index
    %c0_18 = arith.constant 0 : index
    %c0_19 = arith.constant 0 : index
    %15 = vector.load %arg1[%c4, %c0_18, %c0_19] : memref<16x32x128xbf16, #tpu.memory_space<vmem>>, vector<1x32x128xbf16>
    %16 = vector.shape_cast %15 : vector<1x32x128xbf16> to vector<32x128xbf16>
    %c5 = arith.constant 5 : index
    %c0_20 = arith.constant 0 : index
    %c0_21 = arith.constant 0 : index
    %17 = vector.load %arg1[%c5, %c0_20, %c0_21] : memref<16x32x128xbf16, #tpu.memory_space<vmem>>, vector<1x32x128xbf16>
    %18 = vector.shape_cast %17 : vector<1x32x128xbf16> to vector<32x128xbf16>
    %c6 = arith.constant 6 : index
    %c0_22 = arith.constant 0 : index
    %c0_23 = arith.constant 0 : index
    %19 = vector.load %arg1[%c6, %c0_22, %c0_23] : memref<16x32x128xbf16, #tpu.memory_space<vmem>>, vector<1x32x128xbf16>
    %20 = vector.shape_cast %19 : vector<1x32x128xbf16> to vector<32x128xbf16>
    %c7 = arith.constant 7 : index
    %c0_24 = arith.constant 0 : index
    %c0_25 = arith.constant 0 : index
    %21 = vector.load %arg1[%c7, %c0_24, %c0_25] : memref<16x32x128xbf16, #tpu.memory_space<vmem>>, vector<1x32x128xbf16>
    %22 = vector.shape_cast %21 : vector<1x32x128xbf16> to vector<32x128xbf16>
    %23 = arith.addf %8, %10 : vector<32x128xbf16>
    %24 = arith.addf %12, %14 : vector<32x128xbf16>
    %25 = arith.addf %16, %18 : vector<32x128xbf16>
    %26 = arith.addf %20, %22 : vector<32x128xbf16>
    %27 = arith.addf %23, %24 : vector<32x128xbf16>
    %28 = arith.addf %25, %26 : vector<32x128xbf16>
    %29 = arith.addf %27, %28 : vector<32x128xbf16>
    %30 = arith.extf %29 : vector<32x128xbf16> to vector<32x128xf32>
    %31 = arith.addf %30, %1 : vector<32x128xf32>
    %32 = vector.broadcast %3 : vector<1x128xf32> to vector<32x128xf32>
    %33 = arith.mulf %31, %32 : vector<32x128xf32>
    %34 = vector.broadcast %4 : vector<1x128xf32> to vector<32x128xf32>
    %35 = arith.addf %33, %34 : vector<32x128xf32>
    %36 = arith.mulf %35, %35 : vector<32x128xf32>
    %37 = arith.mulf %35, %36 : vector<32x128xf32>
    %cst = arith.constant 4.471500e-02 : f32
    %38 = vector.broadcast %cst : f32 to vector<32x128xf32>
    %39 = arith.mulf %38, %37 : vector<32x128xf32>
    %40 = arith.addf %35, %39 : vector<32x128xf32>
    %cst_26 = arith.constant 0.797884583 : f32
    %41 = vector.broadcast %cst_26 : f32 to vector<32x128xf32>
    %42 = arith.mulf %41, %40 : vector<32x128xf32>
    %43 = math.tanh %42 : vector<32x128xf32>
    %cst_27 = arith.constant 1.000000e+00 : f32
    %44 = vector.broadcast %cst_27 : f32 to vector<32x128xf32>
    %45 = arith.addf %44, %43 : vector<32x128xf32>
    %cst_28 = arith.constant 5.000000e-01 : f32
    %46 = vector.broadcast %cst_28 : f32 to vector<32x128xf32>
    %47 = arith.mulf %46, %45 : vector<32x128xf32>
    %48 = arith.mulf %35, %47 : vector<32x128xf32>
    %c8 = arith.constant 8 : index
    %c0_29 = arith.constant 0 : index
    %c0_30 = arith.constant 0 : index
    %49 = vector.load %arg1[%c8, %c0_29, %c0_30] : memref<16x32x128xbf16, #tpu.memory_space<vmem>>, vector<1x32x128xbf16>
    %50 = vector.shape_cast %49 : vector<1x32x128xbf16> to vector<32x128xbf16>
    %c9 = arith.constant 9 : index
    %c0_31 = arith.constant 0 : index
    %c0_32 = arith.constant 0 : index
    %51 = vector.load %arg1[%c9, %c0_31, %c0_32] : memref<16x32x128xbf16, #tpu.memory_space<vmem>>, vector<1x32x128xbf16>
    %52 = vector.shape_cast %51 : vector<1x32x128xbf16> to vector<32x128xbf16>
    %c10 = arith.constant 10 : index
    %c0_33 = arith.constant 0 : index
    %c0_34 = arith.constant 0 : index
    %53 = vector.load %arg1[%c10, %c0_33, %c0_34] : memref<16x32x128xbf16, #tpu.memory_space<vmem>>, vector<1x32x128xbf16>
    %54 = vector.shape_cast %53 : vector<1x32x128xbf16> to vector<32x128xbf16>
    %c11 = arith.constant 11 : index
    %c0_35 = arith.constant 0 : index
    %c0_36 = arith.constant 0 : index
    %55 = vector.load %arg1[%c11, %c0_35, %c0_36] : memref<16x32x128xbf16, #tpu.memory_space<vmem>>, vector<1x32x128xbf16>
    %56 = vector.shape_cast %55 : vector<1x32x128xbf16> to vector<32x128xbf16>
    %c12 = arith.constant 12 : index
    %c0_37 = arith.constant 0 : index
    %c0_38 = arith.constant 0 : index
    %57 = vector.load %arg1[%c12, %c0_37, %c0_38] : memref<16x32x128xbf16, #tpu.memory_space<vmem>>, vector<1x32x128xbf16>
    %58 = vector.shape_cast %57 : vector<1x32x128xbf16> to vector<32x128xbf16>
    %c13 = arith.constant 13 : index
    %c0_39 = arith.constant 0 : index
    %c0_40 = arith.constant 0 : index
    %59 = vector.load %arg1[%c13, %c0_39, %c0_40] : memref<16x32x128xbf16, #tpu.memory_space<vmem>>, vector<1x32x128xbf16>
    %60 = vector.shape_cast %59 : vector<1x32x128xbf16> to vector<32x128xbf16>
    %c14 = arith.constant 14 : index
    %c0_41 = arith.constant 0 : index
    %c0_42 = arith.constant 0 : index
    %61 = vector.load %arg1[%c14, %c0_41, %c0_42] : memref<16x32x128xbf16, #tpu.memory_space<vmem>>, vector<1x32x128xbf16>
    %62 = vector.shape_cast %61 : vector<1x32x128xbf16> to vector<32x128xbf16>
    %c15 = arith.constant 15 : index
    %c0_43 = arith.constant 0 : index
    %c0_44 = arith.constant 0 : index
    %63 = vector.load %arg1[%c15, %c0_43, %c0_44] : memref<16x32x128xbf16, #tpu.memory_space<vmem>>, vector<1x32x128xbf16>
    %64 = vector.shape_cast %63 : vector<1x32x128xbf16> to vector<32x128xbf16>
    %65 = arith.addf %50, %52 : vector<32x128xbf16>
    %66 = arith.addf %54, %56 : vector<32x128xbf16>
    %67 = arith.addf %58, %60 : vector<32x128xbf16>
    %68 = arith.addf %62, %64 : vector<32x128xbf16>
    %69 = arith.addf %65, %66 : vector<32x128xbf16>
    %70 = arith.addf %67, %68 : vector<32x128xbf16>
    %71 = arith.addf %69, %70 : vector<32x128xbf16>
    %72 = arith.extf %71 : vector<32x128xbf16> to vector<32x128xf32>
    %73 = arith.addf %72, %2 : vector<32x128xf32>
    %74 = vector.broadcast %3 : vector<1x128xf32> to vector<32x128xf32>
    %75 = arith.mulf %73, %74 : vector<32x128xf32>
    %76 = vector.broadcast %4 : vector<1x128xf32> to vector<32x128xf32>
    %77 = arith.addf %75, %76 : vector<32x128xf32>
    %78 = arith.mulf %77, %77 : vector<32x128xf32>
    %79 = arith.mulf %77, %78 : vector<32x128xf32>
    %cst_45 = arith.constant 4.471500e-02 : f32
    %80 = vector.broadcast %cst_45 : f32 to vector<32x128xf32>
    %81 = arith.mulf %80, %79 : vector<32x128xf32>
    %82 = arith.addf %77, %81 : vector<32x128xf32>
    %cst_46 = arith.constant 0.797884583 : f32
    %83 = vector.broadcast %cst_46 : f32 to vector<32x128xf32>
    %84 = arith.mulf %83, %82 : vector<32x128xf32>
    %85 = math.tanh %84 : vector<32x128xf32>
    %cst_47 = arith.constant 1.000000e+00 : f32
    %86 = vector.broadcast %cst_47 : f32 to vector<32x128xf32>
    %87 = arith.addf %86, %85 : vector<32x128xf32>
    %cst_48 = arith.constant 5.000000e-01 : f32
    %88 = vector.broadcast %cst_48 : f32 to vector<32x128xf32>
    %89 = arith.mulf %88, %87 : vector<32x128xf32>
    %90 = arith.mulf %77, %89 : vector<32x128xf32>
    %91 = tpu.concatenate %48, %90 in 0 : vector<32x128xf32>, vector<32x128xf32> -> vector<64x128xf32>
    %92 = arith.truncf %91 : vector<64x128xf32> to vector<64x128xbf16>
    %cst_49 = arith.constant dense<0.000000e+00> : vector<64x128xf32>
    %93 = tpu.matmul %92, %5, %cst_49 {dimension_numbers = #tpu.dot_dimension_numbers<[1], [0], [0], [1], [0, 0, 1, 1], [], []>} : vector<64x128xbf16>, vector<128x128xbf16>, vector<64x128xf32> -> vector<64x128xf32>
    %94 = vector.broadcast %6 : vector<1x128xf32> to vector<64x128xf32>
    %95 = arith.addf %93, %94 : vector<64x128xf32>
    %96 = arith.mulf %95, %95 : vector<64x128xf32>
    %97 = arith.mulf %95, %96 : vector<64x128xf32>
    %cst_50 = arith.constant 4.471500e-02 : f32
    %98 = vector.broadcast %cst_50 : f32 to vector<64x128xf32>
    %99 = arith.mulf %98, %97 : vector<64x128xf32>
    %100 = arith.addf %95, %99 : vector<64x128xf32>
    %cst_51 = arith.constant 0.797884583 : f32
    %101 = vector.broadcast %cst_51 : f32 to vector<64x128xf32>
    %102 = arith.mulf %101, %100 : vector<64x128xf32>
    %103 = math.tanh %102 : vector<64x128xf32>
    %cst_52 = arith.constant 1.000000e+00 : f32
    %104 = vector.broadcast %cst_52 : f32 to vector<64x128xf32>
    %105 = arith.addf %104, %103 : vector<64x128xf32>
    %cst_53 = arith.constant 5.000000e-01 : f32
    %106 = vector.broadcast %cst_53 : f32 to vector<64x128xf32>
    %107 = arith.mulf %106, %105 : vector<64x128xf32>
    %108 = arith.mulf %95, %107 : vector<64x128xf32>
    %c0_54 = arith.constant 0 : index
    %c0_55 = arith.constant 0 : index
    %109 = vector.load %arg7[%c0_54, %c0_55] : memref<128x128xbf16, #tpu.memory_space<vmem>>, vector<128x128xbf16>
    %c0_56 = arith.constant 0 : index
    %c0_57 = arith.constant 0 : index
    %110 = vector.load %arg8[%c0_56, %c0_57] : memref<1x128xf32, #tpu.memory_space<vmem>>, vector<1x128xf32>
    %c0_58 = arith.constant 0 : index
    %c0_59 = arith.constant 0 : index
    %111 = vector.load %arg9[%c0_58, %c0_59] : memref<128x128xbf16, #tpu.memory_space<vmem>>, vector<128x128xbf16>
    %c0_60 = arith.constant 0 : index
    %c0_61 = arith.constant 0 : index
    %112 = vector.load %arg10[%c0_60, %c0_61] : memref<1x128xf32, #tpu.memory_space<vmem>>, vector<1x128xf32>
    %113 = vector.extract_strided_slice %108 {offsets = [0, 0], sizes = [32, 128], strides = [1, 1]} : vector<64x128xf32> to vector<32x128xf32>
    %114 = vector.extract_strided_slice %108 {offsets = [32, 0], sizes = [32, 128], strides = [1, 1]} : vector<64x128xf32> to vector<32x128xf32>
    %c32_i32 = arith.constant 32 : i32
    %115 = tpu.dynamic_rotate %113 by %c32_i32 dim 1 : vector<32x128xf32>, i32 -> vector<32x128xf32>
    %c64_i32 = arith.constant 64 : i32
    %116 = tpu.dynamic_rotate %113 by %c64_i32 dim 1 : vector<32x128xf32>, i32 -> vector<32x128xf32>
    %c96_i32 = arith.constant 96 : i32
    %117 = tpu.dynamic_rotate %113 by %c96_i32 dim 1 : vector<32x128xf32>, i32 -> vector<32x128xf32>
    %c32_i32_62 = arith.constant 32 : i32
    %118 = tpu.dynamic_rotate %114 by %c32_i32_62 dim 1 : vector<32x128xf32>, i32 -> vector<32x128xf32>
    %c64_i32_63 = arith.constant 64 : i32
    %119 = tpu.dynamic_rotate %114 by %c64_i32_63 dim 1 : vector<32x128xf32>, i32 -> vector<32x128xf32>
    %c96_i32_64 = arith.constant 96 : i32
    %120 = tpu.dynamic_rotate %114 by %c96_i32_64 dim 1 : vector<32x128xf32>, i32 -> vector<32x128xf32>
    %c0_65 = arith.constant 0 : index
    %c0_66 = arith.constant 0 : index
    %c0_67 = arith.constant 0 : index
    %121 = vector.load %arg1[%c0_65, %c0_66, %c0_67] : memref<16x32x128xbf16, #tpu.memory_space<vmem>>, vector<1x32x128xbf16>
    %122 = vector.shape_cast %121 : vector<1x32x128xbf16> to vector<32x128xbf16>
    %123 = arith.extf %122 : vector<32x128xbf16> to vector<32x128xf32>
    %124 = arith.mulf %123, %113 : vector<32x128xf32>
    %c1_68 = arith.constant 1 : index
    %c0_69 = arith.constant 0 : index
    %c0_70 = arith.constant 0 : index
    %125 = vector.load %arg1[%c1_68, %c0_69, %c0_70] : memref<16x32x128xbf16, #tpu.memory_space<vmem>>, vector<1x32x128xbf16>
    %126 = vector.shape_cast %125 : vector<1x32x128xbf16> to vector<32x128xbf16>
    %127 = arith.extf %126 : vector<32x128xbf16> to vector<32x128xf32>
    %128 = arith.mulf %127, %115 : vector<32x128xf32>
    %c2_71 = arith.constant 2 : index
    %c0_72 = arith.constant 0 : index
    %c0_73 = arith.constant 0 : index
    %129 = vector.load %arg1[%c2_71, %c0_72, %c0_73] : memref<16x32x128xbf16, #tpu.memory_space<vmem>>, vector<1x32x128xbf16>
    %130 = vector.shape_cast %129 : vector<1x32x128xbf16> to vector<32x128xbf16>
    %131 = arith.extf %130 : vector<32x128xbf16> to vector<32x128xf32>
    %132 = arith.mulf %131, %116 : vector<32x128xf32>
    %c3_74 = arith.constant 3 : index
    %c0_75 = arith.constant 0 : index
    %c0_76 = arith.constant 0 : index
    %133 = vector.load %arg1[%c3_74, %c0_75, %c0_76] : memref<16x32x128xbf16, #tpu.memory_space<vmem>>, vector<1x32x128xbf16>
    %134 = vector.shape_cast %133 : vector<1x32x128xbf16> to vector<32x128xbf16>
    %135 = arith.extf %134 : vector<32x128xbf16> to vector<32x128xf32>
    %136 = arith.mulf %135, %117 : vector<32x128xf32>
    %c4_77 = arith.constant 4 : index
    %c0_78 = arith.constant 0 : index
    %c0_79 = arith.constant 0 : index
    %137 = vector.load %arg1[%c4_77, %c0_78, %c0_79] : memref<16x32x128xbf16, #tpu.memory_space<vmem>>, vector<1x32x128xbf16>
    %138 = vector.shape_cast %137 : vector<1x32x128xbf16> to vector<32x128xbf16>
    %139 = arith.extf %138 : vector<32x128xbf16> to vector<32x128xf32>
    %140 = arith.mulf %139, %114 : vector<32x128xf32>
    %c5_80 = arith.constant 5 : index
    %c0_81 = arith.constant 0 : index
    %c0_82 = arith.constant 0 : index
    %141 = vector.load %arg1[%c5_80, %c0_81, %c0_82] : memref<16x32x128xbf16, #tpu.memory_space<vmem>>, vector<1x32x128xbf16>
    %142 = vector.shape_cast %141 : vector<1x32x128xbf16> to vector<32x128xbf16>
    %143 = arith.extf %142 : vector<32x128xbf16> to vector<32x128xf32>
    %144 = arith.mulf %143, %118 : vector<32x128xf32>
    %c6_83 = arith.constant 6 : index
    %c0_84 = arith.constant 0 : index
    %c0_85 = arith.constant 0 : index
    %145 = vector.load %arg1[%c6_83, %c0_84, %c0_85] : memref<16x32x128xbf16, #tpu.memory_space<vmem>>, vector<1x32x128xbf16>
    %146 = vector.shape_cast %145 : vector<1x32x128xbf16> to vector<32x128xbf16>
    %147 = arith.extf %146 : vector<32x128xbf16> to vector<32x128xf32>
    %148 = arith.mulf %147, %119 : vector<32x128xf32>
    %c7_86 = arith.constant 7 : index
    %c0_87 = arith.constant 0 : index
    %c0_88 = arith.constant 0 : index
    %149 = vector.load %arg1[%c7_86, %c0_87, %c0_88] : memref<16x32x128xbf16, #tpu.memory_space<vmem>>, vector<1x32x128xbf16>
    %150 = vector.shape_cast %149 : vector<1x32x128xbf16> to vector<32x128xbf16>
    %151 = arith.extf %150 : vector<32x128xbf16> to vector<32x128xf32>
    %152 = arith.mulf %151, %120 : vector<32x128xf32>
    %153 = arith.addf %124, %128 : vector<32x128xf32>
    %154 = arith.addf %132, %136 : vector<32x128xf32>
    %155 = arith.addf %140, %144 : vector<32x128xf32>
    %156 = arith.addf %148, %152 : vector<32x128xf32>
    %157 = arith.addf %153, %154 : vector<32x128xf32>
    %158 = arith.addf %155, %156 : vector<32x128xf32>
    %159 = arith.addf %157, %158 : vector<32x128xf32>
    %160 = arith.addf %113, %159 : vector<32x128xf32>
    %c8_89 = arith.constant 8 : index
    %c0_90 = arith.constant 0 : index
    %c0_91 = arith.constant 0 : index
    %161 = vector.load %arg1[%c8_89, %c0_90, %c0_91] : memref<16x32x128xbf16, #tpu.memory_space<vmem>>, vector<1x32x128xbf16>
    %162 = vector.shape_cast %161 : vector<1x32x128xbf16> to vector<32x128xbf16>
    %163 = arith.extf %162 : vector<32x128xbf16> to vector<32x128xf32>
    %164 = arith.mulf %163, %113 : vector<32x128xf32>
    %c9_92 = arith.constant 9 : index
    %c0_93 = arith.constant 0 : index
    %c0_94 = arith.constant 0 : index
    %165 = vector.load %arg1[%c9_92, %c0_93, %c0_94] : memref<16x32x128xbf16, #tpu.memory_space<vmem>>, vector<1x32x128xbf16>
    %166 = vector.shape_cast %165 : vector<1x32x128xbf16> to vector<32x128xbf16>
    %167 = arith.extf %166 : vector<32x128xbf16> to vector<32x128xf32>
    %168 = arith.mulf %167, %115 : vector<32x128xf32>
    %c10_95 = arith.constant 10 : index
    %c0_96 = arith.constant 0 : index
    %c0_97 = arith.constant 0 : index
    %169 = vector.load %arg1[%c10_95, %c0_96, %c0_97] : memref<16x32x128xbf16, #tpu.memory_space<vmem>>, vector<1x32x128xbf16>
    %170 = vector.shape_cast %169 : vector<1x32x128xbf16> to vector<32x128xbf16>
    %171 = arith.extf %170 : vector<32x128xbf16> to vector<32x128xf32>
    %172 = arith.mulf %171, %116 : vector<32x128xf32>
    %c11_98 = arith.constant 11 : index
    %c0_99 = arith.constant 0 : index
    %c0_100 = arith.constant 0 : index
    %173 = vector.load %arg1[%c11_98, %c0_99, %c0_100] : memref<16x32x128xbf16, #tpu.memory_space<vmem>>, vector<1x32x128xbf16>
    %174 = vector.shape_cast %173 : vector<1x32x128xbf16> to vector<32x128xbf16>
    %175 = arith.extf %174 : vector<32x128xbf16> to vector<32x128xf32>
    %176 = arith.mulf %175, %117 : vector<32x128xf32>
    %c12_101 = arith.constant 12 : index
    %c0_102 = arith.constant 0 : index
    %c0_103 = arith.constant 0 : index
    %177 = vector.load %arg1[%c12_101, %c0_102, %c0_103] : memref<16x32x128xbf16, #tpu.memory_space<vmem>>, vector<1x32x128xbf16>
    %178 = vector.shape_cast %177 : vector<1x32x128xbf16> to vector<32x128xbf16>
    %179 = arith.extf %178 : vector<32x128xbf16> to vector<32x128xf32>
    %180 = arith.mulf %179, %114 : vector<32x128xf32>
    %c13_104 = arith.constant 13 : index
    %c0_105 = arith.constant 0 : index
    %c0_106 = arith.constant 0 : index
    %181 = vector.load %arg1[%c13_104, %c0_105, %c0_106] : memref<16x32x128xbf16, #tpu.memory_space<vmem>>, vector<1x32x128xbf16>
    %182 = vector.shape_cast %181 : vector<1x32x128xbf16> to vector<32x128xbf16>
    %183 = arith.extf %182 : vector<32x128xbf16> to vector<32x128xf32>
    %184 = arith.mulf %183, %118 : vector<32x128xf32>
    %c14_107 = arith.constant 14 : index
    %c0_108 = arith.constant 0 : index
    %c0_109 = arith.constant 0 : index
    %185 = vector.load %arg1[%c14_107, %c0_108, %c0_109] : memref<16x32x128xbf16, #tpu.memory_space<vmem>>, vector<1x32x128xbf16>
    %186 = vector.shape_cast %185 : vector<1x32x128xbf16> to vector<32x128xbf16>
    %187 = arith.extf %186 : vector<32x128xbf16> to vector<32x128xf32>
    %188 = arith.mulf %187, %119 : vector<32x128xf32>
    %c15_110 = arith.constant 15 : index
    %c0_111 = arith.constant 0 : index
    %c0_112 = arith.constant 0 : index
    %189 = vector.load %arg1[%c15_110, %c0_111, %c0_112] : memref<16x32x128xbf16, #tpu.memory_space<vmem>>, vector<1x32x128xbf16>
    %190 = vector.shape_cast %189 : vector<1x32x128xbf16> to vector<32x128xbf16>
    %191 = arith.extf %190 : vector<32x128xbf16> to vector<32x128xf32>
    %192 = arith.mulf %191, %120 : vector<32x128xf32>
    %193 = arith.addf %164, %168 : vector<32x128xf32>
    %194 = arith.addf %172, %176 : vector<32x128xf32>
    %195 = arith.addf %180, %184 : vector<32x128xf32>
    %196 = arith.addf %188, %192 : vector<32x128xf32>
    %197 = arith.addf %193, %194 : vector<32x128xf32>
    %198 = arith.addf %195, %196 : vector<32x128xf32>
    %199 = arith.addf %197, %198 : vector<32x128xf32>
    %200 = arith.addf %114, %199 : vector<32x128xf32>
    %201 = tpu.concatenate %160, %200 in 0 : vector<32x128xf32>, vector<32x128xf32> -> vector<64x128xf32>
    %202 = arith.truncf %201 : vector<64x128xf32> to vector<64x128xbf16>
    %cst_113 = arith.constant dense<0.000000e+00> : vector<64x128xf32>
    %203 = tpu.matmul %202, %109, %cst_113 {dimension_numbers = #tpu.dot_dimension_numbers<[1], [0], [0], [1], [0, 0, 1, 1], [], []>} : vector<64x128xbf16>, vector<128x128xbf16>, vector<64x128xf32> -> vector<64x128xf32>
    %204 = vector.broadcast %110 : vector<1x128xf32> to vector<64x128xf32>
    %205 = arith.addf %203, %204 : vector<64x128xf32>
    %206 = arith.mulf %205, %205 : vector<64x128xf32>
    %207 = arith.mulf %205, %206 : vector<64x128xf32>
    %cst_114 = arith.constant 4.471500e-02 : f32
    %208 = vector.broadcast %cst_114 : f32 to vector<64x128xf32>
    %209 = arith.mulf %208, %207 : vector<64x128xf32>
    %210 = arith.addf %205, %209 : vector<64x128xf32>
    %cst_115 = arith.constant 0.797884583 : f32
    %211 = vector.broadcast %cst_115 : f32 to vector<64x128xf32>
    %212 = arith.mulf %211, %210 : vector<64x128xf32>
    %213 = math.tanh %212 : vector<64x128xf32>
    %cst_116 = arith.constant 1.000000e+00 : f32
    %214 = vector.broadcast %cst_116 : f32 to vector<64x128xf32>
    %215 = arith.addf %214, %213 : vector<64x128xf32>
    %cst_117 = arith.constant 5.000000e-01 : f32
    %216 = vector.broadcast %cst_117 : f32 to vector<64x128xf32>
    %217 = arith.mulf %216, %215 : vector<64x128xf32>
    %218 = arith.mulf %205, %217 : vector<64x128xf32>
    %219 = arith.truncf %218 : vector<64x128xf32> to vector<64x128xbf16>
    %cst_118 = arith.constant dense<0.000000e+00> : vector<64x128xf32>
    %220 = tpu.matmul %219, %111, %cst_118 {dimension_numbers = #tpu.dot_dimension_numbers<[1], [0], [0], [1], [0, 0, 1, 1], [], []>} : vector<64x128xbf16>, vector<128x128xbf16>, vector<64x128xf32> -> vector<64x128xf32>
    %221 = vector.broadcast %112 : vector<1x128xf32> to vector<64x128xf32>
    %222 = arith.addf %220, %221 : vector<64x128xf32>
    %223 = arith.mulf %222, %222 : vector<64x128xf32>
    %224 = arith.mulf %222, %223 : vector<64x128xf32>
    %cst_119 = arith.constant 4.471500e-02 : f32
    %225 = vector.broadcast %cst_119 : f32 to vector<64x128xf32>
    %226 = arith.mulf %225, %224 : vector<64x128xf32>
    %227 = arith.addf %222, %226 : vector<64x128xf32>
    %cst_120 = arith.constant 0.797884583 : f32
    %228 = vector.broadcast %cst_120 : f32 to vector<64x128xf32>
    %229 = arith.mulf %228, %227 : vector<64x128xf32>
    %230 = math.tanh %229 : vector<64x128xf32>
    %cst_121 = arith.constant 1.000000e+00 : f32
    %231 = vector.broadcast %cst_121 : f32 to vector<64x128xf32>
    %232 = arith.addf %231, %230 : vector<64x128xf32>
    %cst_122 = arith.constant 5.000000e-01 : f32
    %233 = vector.broadcast %cst_122 : f32 to vector<64x128xf32>
    %234 = arith.mulf %233, %232 : vector<64x128xf32>
    %235 = arith.mulf %222, %234 : vector<64x128xf32>
    %236 = arith.truncf %235 : vector<64x128xf32> to vector<64x128xbf16>
    %c0_123 = arith.constant 0 : index
    %c0_124 = arith.constant 0 : index
    %237 = vector.load %arg11[%c0_123, %c0_124] : memref<128x128xbf16, #tpu.memory_space<vmem>>, vector<128x128xbf16>
    %cst_125 = arith.constant dense<0.000000e+00> : vector<64x128xf32>
    %238 = tpu.matmul %236, %237, %cst_125 {dimension_numbers = #tpu.dot_dimension_numbers<[1], [0], [0], [1], [0, 0, 1, 1], [], []>} : vector<64x128xbf16>, vector<128x128xbf16>, vector<64x128xf32> -> vector<64x128xf32>
    %c0_126 = arith.constant 0 : index
    %c0_127 = arith.constant 0 : index
    %239 = vector.load %arg12[%c0_126, %c0_127] : memref<1x128xf32, #tpu.memory_space<vmem>>, vector<1x128xf32>
    %240 = vector.broadcast %239 : vector<1x128xf32> to vector<64x128xf32>
    %241 = arith.addf %238, %240 : vector<64x128xf32>
    %242 = arith.mulf %241, %241 : vector<64x128xf32>
    %243 = arith.mulf %241, %242 : vector<64x128xf32>
    %cst_128 = arith.constant 4.471500e-02 : f32
    %244 = vector.broadcast %cst_128 : f32 to vector<64x128xf32>
    %245 = arith.mulf %244, %243 : vector<64x128xf32>
    %246 = arith.addf %241, %245 : vector<64x128xf32>
    %cst_129 = arith.constant 0.797884583 : f32
    %247 = vector.broadcast %cst_129 : f32 to vector<64x128xf32>
    %248 = arith.mulf %247, %246 : vector<64x128xf32>
    %249 = math.tanh %248 : vector<64x128xf32>
    %cst_130 = arith.constant 1.000000e+00 : f32
    %250 = vector.broadcast %cst_130 : f32 to vector<64x128xf32>
    %251 = arith.addf %250, %249 : vector<64x128xf32>
    %cst_131 = arith.constant 5.000000e-01 : f32
    %252 = vector.broadcast %cst_131 : f32 to vector<64x128xf32>
    %253 = arith.mulf %252, %251 : vector<64x128xf32>
    %254 = arith.mulf %241, %253 : vector<64x128xf32>
    %255 = vector.extract_strided_slice %254 {offsets = [0, 0], sizes = [32, 128], strides = [1, 1]} : vector<64x128xf32> to vector<32x128xf32>
    %256 = arith.mulf %255, %1 : vector<32x128xf32>
    %257 = vector.extract_strided_slice %254 {offsets = [32, 0], sizes = [32, 128], strides = [1, 1]} : vector<64x128xf32> to vector<32x128xf32>
    %258 = arith.mulf %257, %2 : vector<32x128xf32>
    %259 = arith.addf %256, %258 : vector<32x128xf32>
    %c32_i32_132 = arith.constant 32 : i32
    %260 = tpu.dynamic_rotate %259 by %c32_i32_132 dim 1 : vector<32x128xf32>, i32 -> vector<32x128xf32>
    %261 = arith.addf %259, %260 : vector<32x128xf32>
    %c64_i32_133 = arith.constant 64 : i32
    %262 = tpu.dynamic_rotate %261 by %c64_i32_133 dim 1 : vector<32x128xf32>, i32 -> vector<32x128xf32>
    %263 = arith.addf %261, %262 : vector<32x128xf32>
    %c0_134 = arith.constant 0 : index
    %c0_135 = arith.constant 0 : index
    %264 = vector.load %arg13[%c0_134, %c0_135] : memref<32x128xf32, #tpu.memory_space<vmem>>, vector<32x128xf32>
    tpu.vector_store %arg13[%c0_134, %c0_135], %263 {strides = array<i32>} : memref<32x128xf32, #tpu.memory_space<vmem>>, vector<32x128xf32>,
    return
  }
  func.func @transform_0(%arg0: i32) -> (i32, i32, i32) {
    %c0_i32 = arith.constant 0 : i32
    %c0_i32_0 = arith.constant 0 : i32
    %c0_i32_1 = arith.constant 0 : i32
    return %c0_i32, %arg0, %c0_i32_0 : i32, i32, i32
  }
  func.func @transform_1(%arg0: i32) -> (i32, i32) {
    %c0_i32 = arith.constant 0 : i32
    %c0_i32_0 = arith.constant 0 : i32
    return %arg0, %c0_i32 : i32, i32
  }
  func.func @transform_2(%arg0: i32) -> (i32, i32) {
    %c0_i32 = arith.constant 0 : i32
    %c0_i32_0 = arith.constant 0 : i32
    %c0_i32_1 = arith.constant 0 : i32
    return %c0_i32, %c0_i32_0 : i32, i32
  }
  func.func @transform_3(%arg0: i32) -> (i32, i32) {
    %c0_i32 = arith.constant 0 : i32
    %c0_i32_0 = arith.constant 0 : i32
    %c0_i32_1 = arith.constant 0 : i32
    return %c0_i32, %c0_i32_0 : i32, i32
  }
  func.func @transform_4(%arg0: i32) -> (i32, i32) {
    %c0_i32 = arith.constant 0 : i32
    %c0_i32_0 = arith.constant 0 : i32
    %c0_i32_1 = arith.constant 0 : i32
    return %c0_i32, %c0_i32_0 : i32, i32
  }
  func.func @transform_5(%arg0: i32) -> (i32, i32) {
    %c0_i32 = arith.constant 0 : i32
    %c0_i32_0 = arith.constant 0 : i32
    %c0_i32_1 = arith.constant 0 : i32
    return %c0_i32, %c0_i32_0 : i32, i32
  }
  func.func @transform_6(%arg0: i32) -> (i32, i32) {
    %c0_i32 = arith.constant 0 : i32
    %c0_i32_0 = arith.constant 0 : i32
    %c0_i32_1 = arith.constant 0 : i32
    return %c0_i32, %c0_i32_0 : i32, i32
  }
  func.func @transform_7(%arg0: i32) -> (i32, i32) {
    %c0_i32 = arith.constant 0 : i32
    %c0_i32_0 = arith.constant 0 : i32
    %c0_i32_1 = arith.constant 0 : i32
    return %c0_i32, %c0_i32_0 : i32, i32
  }
  func.func @transform_8(%arg0: i32) -> (i32, i32) {
    %c0_i32 = arith.constant 0 : i32
    %c0_i32_0 = arith.constant 0 : i32
    %c0_i32_1 = arith.constant 0 : i32
    return %c0_i32, %c0_i32_0 : i32, i32
  }
  func.func @transform_9(%arg0: i32) -> (i32, i32) {
    %c0_i32 = arith.constant 0 : i32
    %c0_i32_0 = arith.constant 0 : i32
    %c0_i32_1 = arith.constant 0 : i32
    return %c0_i32, %c0_i32_0 : i32, i32
  }
  func.func @transform_10(%arg0: i32) -> (i32, i32) {
    %c0_i32 = arith.constant 0 : i32
    %c0_i32_0 = arith.constant 0 : i32
    %c0_i32_1 = arith.constant 0 : i32
    return %c0_i32, %c0_i32_0 : i32, i32
  }
  func.func @transform_11(%arg0: i32) -> (i32, i32) {
    %c0_i32 = arith.constant 0 : i32
    %c0_i32_0 = arith.constant 0 : i32
    %c0_i32_1 = arith.constant 0 : i32
    return %c0_i32, %c0_i32_0 : i32, i32
  }
  func.func @transform_12(%arg0: i32) -> (i32, i32) {
    %c0_i32 = arith.constant 0 : i32
    %c0_i32_0 = arith.constant 0 : i32
    return %arg0, %c0_i32 : i32, i32
  }
}

</mosaic_0001>

<llo_original>
// kernel: tpu_custom_call.1
$region0: #{tpu_custom_call.1}
  #allocation0 [shape = 'u32[]', space=smem, size = 0x4, offset = 0x4, fixed_abs, tag = 'smem constant byte address 0x4 - core index']
  #allocation1 [shape = 'u32[144,128]{1,0:T(1,128)}', space=vmem, size = 0x12000, scoped, tag = 'internal scratch']
  #allocation14 [shape = 's32[]', space=sflag, size = 0x4, offset = 0, fixed_abs, tag = 'sflag constant byte address 0x0 - dummy sync flag']
  %s0 = inlined_call_operand.hbm [shape: bf16[16,256,128], index: 0, kind: input, shape index: {}]
  %s1 = inlined_call_operand.hbm [shape: f32[256,256], index: 1, kind: input, shape index: {}]
  %s2 = inlined_call_operand.vmem [shape: f32[1,128], index: 2, kind: input, shape index: {}]
  %s3 = inlined_call_operand.vmem [shape: f32[1,128], index: 3, kind: input, shape index: {}]
  %s4 = inlined_call_operand.hbm [shape: bf16[128,128], index: 4, kind: input, shape index: {}]
  %s5 = inlined_call_operand.vmem [shape: f32[1,128], index: 5, kind: input, shape index: {}]
  %s6 = inlined_call_operand.hbm [shape: bf16[128,128], index: 6, kind: input, shape index: {}]
  %s7 = inlined_call_operand.vmem [shape: f32[1,128], index: 7, kind: input, shape index: {}]
  %s8 = inlined_call_operand.hbm [shape: bf16[128,128], index: 8, kind: input, shape index: {}]
  %s9 = inlined_call_operand.vmem [shape: f32[1,128], index: 9, kind: input, shape index: {}]
  %s10 = inlined_call_operand.hbm [shape: bf16[128,128], index: 10, kind: input, shape index: {}]
  %s11 = inlined_call_operand.vmem [shape: f32[1,128], index: 11, kind: input, shape index: {}]
  %s12 = inlined_call_operand.hbm [shape: f32[256,128], index: 12, kind: output, shape index: {}]
  %s13 = sld [smem:[#allocation0]]
  $region105: #{tpu_custom_call.1} parent=0
    _
  %s15 = ssub.s32 1, %s13
  %s16 = scalar_select 0, %s15, %s13
  $region1: #{tpu_custom_call.1} parent=0
    #allocation2 [shape = 'u8[262144]{0}', space=vmem, size = 0x40000, scoped, tag = 'input window, operand 0']
    #allocation3 [shape = 's32[2]{0}', space=sflag, size = 0x8, scoped, tag = 'scoped memory for tpu_custom_call.1']
    #allocation4 [shape = 's32[2]{0}', space=sflag, size = 0x8, scoped, tag = 'scoped memory for tpu_custom_call.1']
    #allocation5 [shape = 'u8[65536]{0}', space=vmem, size = 0x10000, scoped, tag = 'input window, operand 1']
    #allocation6 [shape = 's32[2]{0}', space=sflag, size = 0x8, scoped, tag = 'scoped memory for tpu_custom_call.1']
    #allocation7 [shape = 'u8[32768]{0}', space=vmem, size = 0x8000, scoped, tag = 'input window, operand 4, single buffered']
    #allocation8 [shape = 'u8[32768]{0}', space=vmem, size = 0x8000, scoped, tag = 'input window, operand 6, single buffered']
    #allocation9 [shape = 's32[1]{0}', space=sflag, size = 0x4, scoped, tag = 'scoped memory for tpu_custom_call.1']
    #allocation10 [shape = 'u8[32768]{0}', space=vmem, size = 0x8000, scoped, tag = 'input window, operand 8, single buffered']
    #allocation11 [shape = 'u8[32768]{0}', space=vmem, size = 0x8000, scoped, tag = 'input window, operand 10, single buffered']
    #allocation12 [shape = 's32[1]{0}', space=sflag, size = 0x4, scoped, tag = 'scoped memory for tpu_custom_call.1']
    #allocation13 [shape = 'u8[32768]{0}', space=vmem, size = 0x8000, scoped, tag = 'output window, operand 0']
    %17 = vsyncpa [#allocation3], 0
    %s18 = scalar_lea.sflag [#allocation3], 1
    %19 = vsyncpa %s18, 0
    %20 = vsyncpa [#allocation6], 0
    %s21 = scalar_lea.sflag [#allocation6], 1
    %22 = vsyncpa %s21, 0
    %23 = vsyncpa [#allocation9], 0
    %24 = vsyncpa [#allocation12], 0
    %25 = vsyncpa [#allocation4], 0
    %s26 = scalar_lea.sflag [#allocation4], 1
    %27 = vsyncpa %s26, 0
    loop: start=0, step=1, limit=10
    $region2: #{tpu_custom_call.1} parent=1 // loop_pre_header
      _
    $region3: #{tpu_custom_call.1} parent=1 // loop_header
      %s29 = sphi 0, %s33
      %p30 = scmp.ge.s32.totalorder %s29, 10
      %s39 = sphi 0, %s41
      %s42 = sphi 0, %s39
      %s43 = sphi 0, %s42
      %s59 = sphi 0, %s43
      %s65 = sphi 0, %s67
      %s68 = sphi 0, %s65
      %s69 = sphi 0, %s68
      %s85 = sphi 0, %s69
      %s89 = sphi 0, %s89
      %s91 = sphi 0, %s89
      %s92 = sphi 0, %s91
      %s106 = sphi 0, %s92
      %s110 = sphi 0, %s110
      %s112 = sphi 0, %s110
      %s113 = sphi 0, %s112
      %s127 = sphi 0, %s113
      %s131 = sphi 0, %s131
      %s133 = sphi 0, %s131
      %s134 = sphi 0, %s133
      %s148 = sphi 0, %s134
      %s152 = sphi 0, %s152
      %s154 = sphi 0, %s152
      %s155 = sphi 0, %s154
      %s169 = sphi 0, %s155
      %s173 = sphi 0, %s173
      %s175 = sphi 0, %s173
      %s176 = sphi 0, %s175
      %s190 = sphi 0, %s176
      %s194 = sphi 0, %s194
      %s196 = sphi 0, %s194
      %s197 = sphi 0, %s196
      %s211 = sphi 0, %s197
      %s215 = sphi 0, %s215
      %s217 = sphi 0, %s215
      %s218 = sphi 0, %s217
      %s232 = sphi 0, %s218
      %s236 = sphi 0, %s236
      %s238 = sphi 0, %s236
      %s239 = sphi 0, %s238
      %s253 = sphi 0, %s239
      %s257 = sphi 0, %s257
      %s259 = sphi 0, %s257
      %s260 = sphi 0, %s259
      %s274 = sphi 0, %s260
      %s278 = sphi 0, %s278
      %s280 = sphi 0, %s278
      %s281 = sphi 0, %s280
      %s295 = sphi 0, %s281
      %s301 = sphi 0, %s303
      %s304 = sphi 0, %s301
      %s305 = sphi 0, %s304
      %s321 = sphi 0, %s305
    $region4: #{tpu_custom_call.1} parent=1 // loop_header_branch
      %32 = sbr.rel (%p30) target = $region8
    $region5: #{tpu_custom_call.1} parent=1 // loop_body
      %s34 = ssub.s32 %s29, 1
      %s35 = ssub.s32 %s29, 2
      %s36 = sadd.s32 %s29, 1
      %s37 = ssub.s32 %s29, %s36
      %p38 = scmp.eq.s32.totalorder %s37, 0
      %s40 = sadd.s32 %s39, 1
      %s41 = scalar_select %p38, %s39, %s40
      %p44 = pneg %p38
      %p45 = scmp.eq.s32.totalorder %s29, 7
      %p46 = por %p44, %p45
      %p47 = scmp.ne.s32.totalorder %s39, %s42
      %p48 = scmp.eq.s32.totalorder %s29, 0
      %p49 = por %p47, %p48
      %p50 = scmp.ne.s32.totalorder %s39, %s42
      %p51 = scmp.eq.s32.totalorder %s34, 7
      %p52 = por %p50, %p51
      %p53 = scmp.ne.s32.totalorder %s42, %s43
      %p54 = scmp.eq.s32.totalorder %s34, 0
      %p55 = por %p53, %p54
      %p56 = scmp.ne.s32.totalorder %s42, %s43
      %p57 = scmp.eq.s32.totalorder %s35, 7
      %p58 = por %p56, %p57
      %p60 = scmp.ne.s32.totalorder %s43, %s59
      %p61 = scmp.eq.s32.totalorder %s35, 0
      %p62 = por %p60, %p61
      %s63 = ssub.s32 %s29, %s36
      %p64 = scmp.eq.s32.totalorder %s63, 0
      %s66 = sadd.s32 %s65, 1
      %s67 = scalar_select %p64, %s65, %s66
      %p70 = pneg %p64
      %p71 = scmp.eq.s32.totalorder %s29, 7
      %p72 = por %p70, %p71
      %p73 = scmp.ne.s32.totalorder %s65, %s68
      %p74 = scmp.eq.s32.totalorder %s29, 0
      %p75 = por %p73, %p74
      %p76 = scmp.ne.s32.totalorder %s65, %s68
      %p77 = scmp.eq.s32.totalorder %s34, 7
      %p78 = por %p76, %p77
      %p79 = scmp.ne.s32.totalorder %s68, %s69
      %p80 = scmp.eq.s32.totalorder %s34, 0
      %p81 = por %p79, %p80
      %p82 = scmp.ne.s32.totalorder %s68, %s69
      %p83 = scmp.eq.s32.totalorder %s35, 7
      %p84 = por %p82, %p83
      %p86 = scmp.ne.s32.totalorder %s69, %s85
      %p87 = scmp.eq.s32.totalorder %s35, 0
      %p88 = por %p86, %p87
      %s90 = sadd.s32 %s89, 1
      %p93 = scmp.eq.s32.totalorder %s29, 7
      %p94 = scmp.ne.s32.totalorder %s89, %s91
      %p95 = scmp.eq.s32.totalorder %s29, 0
      %p96 = por %p94, %p95
      %p97 = scmp.ne.s32.totalorder %s89, %s91
      %p98 = scmp.eq.s32.totalorder %s34, 7
      %p99 = por %p97, %p98
      %p100 = scmp.ne.s32.totalorder %s91, %s92
      %p101 = scmp.eq.s32.totalorder %s34, 0
      %p102 = por %p100, %p101
      %p103 = scmp.ne.s32.totalorder %s91, %s92
      %p104 = scmp.eq.s32.totalorder %s35, 7
      %p105 = por %p103, %p104
      %p107 = scmp.ne.s32.totalorder %s92, %s106
      %p108 = scmp.eq.s32.totalorder %s35, 0
      %p109 = por %p107, %p108
      %s111 = sadd.s32 %s110, 1
      %p114 = scmp.eq.s32.totalorder %s29, 7
      %p115 = scmp.ne.s32.totalorder %s110, %s112
      %p116 = scmp.eq.s32.totalorder %s29, 0
      %p117 = por %p115, %p116
      %p118 = scmp.ne.s32.totalorder %s110, %s112
      %p119 = scmp.eq.s32.totalorder %s34, 7
      %p120 = por %p118, %p119
      %p121 = scmp.ne.s32.totalorder %s112, %s113
      %p122 = scmp.eq.s32.totalorder %s34, 0
      %p123 = por %p121, %p122
      %p124 = scmp.ne.s32.totalorder %s112, %s113
      %p125 = scmp.eq.s32.totalorder %s35, 7
      %p126 = por %p124, %p125
      %p128 = scmp.ne.s32.totalorder %s113, %s127
      %p129 = scmp.eq.s32.totalorder %s35, 0
      %p130 = por %p128, %p129
      %s132 = sadd.s32 %s131, 1
      %p135 = scmp.eq.s32.totalorder %s29, 7
      %p136 = scmp.ne.s32.totalorder %s131, %s133
      %p137 = scmp.eq.s32.totalorder %s29, 0
      %p138 = por %p136, %p137
      %p139 = scmp.ne.s32.totalorder %s131, %s133
      %p140 = scmp.eq.s32.totalorder %s34, 7
      %p141 = por %p139, %p140
      %p142 = scmp.ne.s32.totalorder %s133, %s134
      %p143 = scmp.eq.s32.totalorder %s34, 0
      %p144 = por %p142, %p143
      %p145 = scmp.ne.s32.totalorder %s133, %s134
      %p146 = scmp.eq.s32.totalorder %s35, 7
      %p147 = por %p145, %p146
      %p149 = scmp.ne.s32.totalorder %s134, %s148
      %p150 = scmp.eq.s32.totalorder %s35, 0
      %p151 = por %p149, %p150
      %s153 = sadd.s32 %s152, 1
      %p156 = scmp.eq.s32.totalorder %s29, 7
      %p157 = scmp.ne.s32.totalorder %s152, %s154
      %p158 = scmp.eq.s32.totalorder %s29, 0
      %p159 = por %p157, %p158
      %p160 = scmp.ne.s32.totalorder %s152, %s154
      %p161 = scmp.eq.s32.totalorder %s34, 7
      %p162 = por %p160, %p161
      %p163 = scmp.ne.s32.totalorder %s154, %s155
      %p164 = scmp.eq.s32.totalorder %s34, 0
      %p165 = por %p163, %p164
      %p166 = scmp.ne.s32.totalorder %s154, %s155
      %p167 = scmp.eq.s32.totalorder %s35, 7
      %p168 = por %p166, %p167
      %p170 = scmp.ne.s32.totalorder %s155, %s169
      %p171 = scmp.eq.s32.totalorder %s35, 0
      %p172 = por %p170, %p171
      %s174 = sadd.s32 %s173, 1
      %p177 = scmp.eq.s32.totalorder %s29, 7
      %p178 = scmp.ne.s32.totalorder %s173, %s175
      %p179 = scmp.eq.s32.totalorder %s29, 0
      %p180 = por %p178, %p179
      %p181 = scmp.ne.s32.totalorder %s173, %s175
      %p182 = scmp.eq.s32.totalorder %s34, 7
      %p183 = por %p181, %p182
      %p184 = scmp.ne.s32.totalorder %s175, %s176
      %p185 = scmp.eq.s32.totalorder %s34, 0
      %p186 = por %p184, %p185
      %p187 = scmp.ne.s32.totalorder %s175, %s176
      %p188 = scmp.eq.s32.totalorder %s35, 7
      %p189 = por %p187, %p188
      %p191 = scmp.ne.s32.totalorder %s176, %s190
      %p192 = scmp.eq.s32.totalorder %s35, 0
      %p193 = por %p191, %p192
      %s195 = sadd.s32 %s194, 1
      %p198 = scmp.eq.s32.totalorder %s29, 7
      %p199 = scmp.ne.s32.totalorder %s194, %s196
      %p200 = scmp.eq.s32.totalorder %s29, 0
      %p201 = por %p199, %p200
      %p202 = scmp.ne.s32.totalorder %s194, %s196
      %p203 = scmp.eq.s32.totalorder %s34, 7
      %p204 = por %p202, %p203
      %p205 = scmp.ne.s32.totalorder %s196, %s197
      %p206 = scmp.eq.s32.totalorder %s34, 0
      %p207 = por %p205, %p206
      %p208 = scmp.ne.s32.totalorder %s196, %s197
      %p209 = scmp.eq.s32.totalorder %s35, 7
      %p210 = por %p208, %p209
      %p212 = scmp.ne.s32.totalorder %s197, %s211
      %p213 = scmp.eq.s32.totalorder %s35, 0
      %p214 = por %p212, %p213
      %s216 = sadd.s32 %s215, 1
      %p219 = scmp.eq.s32.totalorder %s29, 7
      %p220 = scmp.ne.s32.totalorder %s215, %s217
      %p221 = scmp.eq.s32.totalorder %s29, 0
      %p222 = por %p220, %p221
      %p223 = scmp.ne.s32.totalorder %s215, %s217
      %p224 = scmp.eq.s32.totalorder %s34, 7
      %p225 = por %p223, %p224
      %p226 = scmp.ne.s32.totalorder %s217, %s218
      %p227 = scmp.eq.s32.totalorder %s34, 0
      %p228 = por %p226, %p227
      %p229 = scmp.ne.s32.totalorder %s217, %s218
      %p230 = scmp.eq.s32.totalorder %s35, 7
      %p231 = por %p229, %p230
      %p233 = scmp.ne.s32.totalorder %s218, %s232
      %p234 = scmp.eq.s32.totalorder %s35, 0
      %p235 = por %p233, %p234
      %s237 = sadd.s32 %s236, 1
      %p240 = scmp.eq.s32.totalorder %s29, 7
      %p241 = scmp.ne.s32.totalorder %s236, %s238
      %p242 = scmp.eq.s32.totalorder %s29, 0
      %p243 = por %p241, %p242
      %p244 = scmp.ne.s32.totalorder %s236, %s238
      %p245 = scmp.eq.s32.totalorder %s34, 7
      %p246 = por %p244, %p245
      %p247 = scmp.ne.s32.totalorder %s238, %s239
      %p248 = scmp.eq.s32.totalorder %s34, 0
      %p249 = por %p247, %p248
      %p250 = scmp.ne.s32.totalorder %s238, %s239
      %p251 = scmp.eq.s32.totalorder %s35, 7
      %p252 = por %p250, %p251
      %p254 = scmp.ne.s32.totalorder %s239, %s253
      %p255 = scmp.eq.s32.totalorder %s35, 0
      %p256 = por %p254, %p255
      %s258 = sadd.s32 %s257, 1
      %p261 = scmp.eq.s32.totalorder %s29, 7
      %p262 = scmp.ne.s32.totalorder %s257, %s259
      %p263 = scmp.eq.s32.totalorder %s29, 0
      %p264 = por %p262, %p263
      %p265 = scmp.ne.s32.totalorder %s257, %s259
      %p266 = scmp.eq.s32.totalorder %s34, 7
      %p267 = por %p265, %p266
      %p268 = scmp.ne.s32.totalorder %s259, %s260
      %p269 = scmp.eq.s32.totalorder %s34, 0
      %p270 = por %p268, %p269
      %p271 = scmp.ne.s32.totalorder %s259, %s260
      %p272 = scmp.eq.s32.totalorder %s35, 7
      %p273 = por %p271, %p272
      %p275 = scmp.ne.s32.totalorder %s260, %s274
      %p276 = scmp.eq.s32.totalorder %s35, 0
      %p277 = por %p275, %p276
      %s279 = sadd.s32 %s278, 1
      %p282 = scmp.eq.s32.totalorder %s29, 7
      %p283 = scmp.ne.s32.totalorder %s278, %s280
      %p284 = scmp.eq.s32.totalorder %s29, 0
      %p285 = por %p283, %p284
      %p286 = scmp.ne.s32.totalorder %s278, %s280
      %p287 = scmp.eq.s32.totalorder %s34, 7
      %p288 = por %p286, %p287
      %p289 = scmp.ne.s32.totalorder %s280, %s281
      %p290 = scmp.eq.s32.totalorder %s34, 0
      %p291 = por %p289, %p290
      %p292 = scmp.ne.s32.totalorder %s280, %s281
      %p293 = scmp.eq.s32.totalorder %s35, 7
      %p294 = por %p292, %p293
      %p296 = scmp.ne.s32.totalorder %s281, %s295
      %p297 = scmp.eq.s32.totalorder %s35, 0
      %p298 = por %p296, %p297
      %s299 = ssub.s32 %s29, %s36
      %p300 = scmp.eq.s32.totalorder %s299, 0
      %s302 = sadd.s32 %s301, 1
      %s303 = scalar_select %p300, %s301, %s302
      %p306 = pneg %p300
      %p307 = scmp.eq.s32.totalorder %s29, 7
      %p308 = por %p306, %p307
      %p309 = scmp.ne.s32.totalorder %s301, %s304
      %p310 = scmp.eq.s32.totalorder %s29, 0
      %p311 = por %p309, %p310
      %p312 = scmp.ne.s32.totalorder %s301, %s304
      %p313 = scmp.eq.s32.totalorder %s34, 7
      %p314 = por %p312, %p313
      %p315 = scmp.ne.s32.totalorder %s304, %s305
      %p316 = scmp.eq.s32.totalorder %s34, 0
      %p317 = por %p315, %p316
      %p318 = scmp.ne.s32.totalorder %s304, %s305
      %p319 = scmp.eq.s32.totalorder %s35, 7
      %p320 = por %p318, %p319
      %p322 = scmp.ne.s32.totalorder %s305, %s321
      %p323 = scmp.eq.s32.totalorder %s35, 0
      %p324 = por %p322, %p323
      %p325 = scmp.le.s32.totalorder 1, %s29
      %p326 = scmp.lt.s32.totalorder %s29, 9
      %p327 = pnand %p325, %p326
      %p328 = pneg %p327
      // Predicated region
      $region9: #{tpu_custom_call.1} parent=5 // pred_check
        _
      $region10: #{tpu_custom_call.1} parent=5 // pred_check_branch
        %330 = sbr.rel (%p327) target = $region12
      $region11: #{tpu_custom_call.1} parent=5 // pred_region
        %s331 = ssub.s32 %s29, 1
        // Predicated region
        $region13: #{tpu_custom_call.1} parent=11 // pred_check
          %p332 = pneg %p102
        $region14: #{tpu_custom_call.1} parent=11 // pred_check_branch
          %334 = sbr.rel (%p332) target = $region16
        $region15: #{tpu_custom_call.1} parent=11 // pred_region
          _
        $region16: #{tpu_custom_call.1} parent=11 // pred_fallthru
          _
        // Predicated region
        $region17: #{tpu_custom_call.1} parent=11 // pred_check
          %p335 = pneg %p123
        $region18: #{tpu_custom_call.1} parent=11 // pred_check_branch
          %337 = sbr.rel (%p335) target = $region20
        $region19: #{tpu_custom_call.1} parent=11 // pred_region
          _
        $region20: #{tpu_custom_call.1} parent=11 // pred_fallthru
          _
        // Predicated region
        $region21: #{tpu_custom_call.1} parent=11 // pred_check
          %p338 = pneg %p144
        $region22: #{tpu_custom_call.1} parent=11 // pred_check_branch
          %340 = sbr.rel (%p338) target = $region24
        $region23: #{tpu_custom_call.1} parent=11 // pred_region
          %s342 = ssub.s32 1024, 1024
          %343 = vsyncadd [#allocation6], %s342
          %s344 = sshll.u32 [#allocation7], 4
          %s345 = int_to_ptr.vmem [resolvable:$true] %s344
          %350 = dma.hbm_to_vmem [thread:$0]  %s4, 1024, %s345, [#allocation6], 64, 64, 4
        $region24: #{tpu_custom_call.1} parent=11 // pred_fallthru
          _
        // Predicated region
        $region25: #{tpu_custom_call.1} parent=11 // pred_check
          %p351 = pneg %p165
        $region26: #{tpu_custom_call.1} parent=11 // pred_check_branch
          %353 = sbr.rel (%p351) target = $region28
        $region27: #{tpu_custom_call.1} parent=11 // pred_region
          _
        $region28: #{tpu_custom_call.1} parent=11 // pred_fallthru
          _
        // Predicated region
        $region29: #{tpu_custom_call.1} parent=11 // pred_check
          %p354 = pneg %p186
        $region30: #{tpu_custom_call.1} parent=11 // pred_check_branch
          %356 = sbr.rel (%p354) target = $region32
        $region31: #{tpu_custom_call.1} parent=11 // pred_region
          %s358 = ssub.s32 1024, 1024
          %359 = vsyncadd [#allocation9], %s358
          %s360 = sshll.u32 [#allocation8], 4
          %s361 = int_to_ptr.vmem [resolvable:$true] %s360
          %366 = dma.hbm_to_vmem [thread:$0]  %s6, 1024, %s361, [#allocation9], 64, 64, 4
        $region32: #{tpu_custom_call.1} parent=11 // pred_fallthru
          _
        // Predicated region
        $region33: #{tpu_custom_call.1} parent=11 // pred_check
          %p367 = pneg %p207
        $region34: #{tpu_custom_call.1} parent=11 // pred_check_branch
          %369 = sbr.rel (%p367) target = $region36
        $region35: #{tpu_custom_call.1} parent=11 // pred_region
          _
        $region36: #{tpu_custom_call.1} parent=11 // pred_fallthru
          _
        // Predicated region
        $region37: #{tpu_custom_call.1} parent=11 // pred_check
          %p370 = pneg %p228
        $region38: #{tpu_custom_call.1} parent=11 // pred_check_branch
          %372 = sbr.rel (%p370) target = $region40
        $region39: #{tpu_custom_call.1} parent=11 // pred_region
          %s374 = ssub.s32 1024, 1024
          %375 = vsyncadd [#allocation9], %s374
          %s376 = sshll.u32 [#allocation10], 4
          %s377 = int_to_ptr.vmem [resolvable:$true] %s376
          %382 = dma.hbm_to_vmem [thread:$0]  %s8, 1024, %s377, [#allocation9], 64, 64, 4
        $region40: #{tpu_custom_call.1} parent=11 // pred_fallthru
          _
        // Predicated region
        $region41: #{tpu_custom_call.1} parent=11 // pred_check
          %p383 = pneg %p249
        $region42: #{tpu_custom_call.1} parent=11 // pred_check_branch
          %385 = sbr.rel (%p383) target = $region44
        $region43: #{tpu_custom_call.1} parent=11 // pred_region
          _
        $region44: #{tpu_custom_call.1} parent=11 // pred_fallthru
          _
        // Predicated region
        $region45: #{tpu_custom_call.1} parent=11 // pred_check
          %p386 = pneg %p270
        $region46: #{tpu_custom_call.1} parent=11 // pred_check_branch
          %388 = sbr.rel (%p386) target = $region48
        $region47: #{tpu_custom_call.1} parent=11 // pred_region
          %s390 = ssub.s32 1024, 1024
          %391 = vsyncadd [#allocation12], %s390
          %s392 = sshll.u32 [#allocation11], 4
          %s393 = int_to_ptr.vmem [resolvable:$true] %s392
          %398 = dma.hbm_to_vmem [thread:$0]  %s10, 1024, %s393, [#allocation12], 64, 64, 4
        $region48: #{tpu_custom_call.1} parent=11 // pred_fallthru
          _
        // Predicated region
        $region49: #{tpu_custom_call.1} parent=11 // pred_check
          %p399 = pneg %p291
        $region50: #{tpu_custom_call.1} parent=11 // pred_check_branch
          %401 = sbr.rel (%p399) target = $region52
        $region51: #{tpu_custom_call.1} parent=11 // pred_region
          _
        $region52: #{tpu_custom_call.1} parent=11 // pred_fallthru
          _
      $region12: #{tpu_custom_call.1} parent=5 // pred_fallthru
        _
      %p402 = scmp.lt.s32.totalorder %s29, 8
      // Predicated region
      $region53: #{tpu_custom_call.1} parent=5 // pred_check
        %p403 = pneg %p402
      $region54: #{tpu_custom_call.1} parent=5 // pred_check_branch
        %405 = sbr.rel (%p403) target = $region56
      $region55: #{tpu_custom_call.1} parent=5 // pred_region
        // Predicated region
        $region57: #{tpu_custom_call.1} parent=55 // pred_check
          %p406 = pneg %p49
        $region58: #{tpu_custom_call.1} parent=55 // pred_check_branch
          %408 = sbr.rel (%p406) target = $region60
        $region59: #{tpu_custom_call.1} parent=55 // pred_region
          #allocation15 [shape = 'u32[6]{0}', space=smem, size = 0x18, scoped, tag = 'DMA stride descriptor']
          %s409 = sand.u32 %s39, 1
          %s410 = scalar_lea.sflag [#allocation3], %s409
          %s411 = sand.u32 %s39, 1
          %s412 = smul.addr %s411, 256
          %s413 = scalar_lea.vmem [#allocation2], %s412
          %s414 = smul.u32 4, %s29
          %s416 = ssub.s32 4096, 4096
          %417 = vsyncadd %s410, %s416
          %s418 = smul.addr %s414, 64
          %s419 = scalar_lea.hbm %s0, %s418
          %s421 = sshll.u32 1, 14
          %s422 = sxor.u32 4294967295, %s421
          %s424 = sld [smem:[#allocation0]]
          %s425 = sadd.s32 2, %s424
          %s427 = sshll.u32 7, 26
          %s428 = sxor.u32 4294967295, %s427
          %s429 = sand.u32 0, %s428
          %s430 = sshll.u32 %s425, 26
          %s431 = sor.u32 %s429, %s430
          %s432 = sshll.u32 %s413, 4
          %s433 = int_to_ptr.vmem [resolvable:$true] %s432
          %439 = sst [smem:[#allocation15]] 2048
          %s440 = scalar_lea.smem [#allocation15], 1
          %441 = sst [smem:[%s440]] 256
          %s442 = scalar_lea.smem [#allocation15], 2
          %443 = sst [smem:[%s442]] 4
          %s444 = scalar_lea.smem [#allocation15], 3
          %445 = sst [smem:[%s444]] 64
          %s446 = scalar_lea.smem [#allocation15], 4
          %447 = sst [smem:[%s446]] 64
          %s448 = scalar_lea.smem [#allocation15], 5
          %449 = sst [smem:[%s448]] 4
          %451 = dma.general %s419, 4096, %s433, %s410, [#allocation14], [#allocation15], %s431, 0
        $region60: #{tpu_custom_call.1} parent=55 // pred_fallthru
          _
        // Predicated region
        $region61: #{tpu_custom_call.1} parent=55 // pred_check
          %p452 = pneg %p75
        $region62: #{tpu_custom_call.1} parent=55 // pred_check_branch
          %454 = sbr.rel (%p452) target = $region64
        $region63: #{tpu_custom_call.1} parent=55 // pred_region
          %s455 = sand.u32 %s29, 1
          %s456 = scalar_lea.sflag [#allocation6], %s455
          %s457 = sand.u32 %s65, 1
          %s458 = smul.addr %s457, 64
          %s459 = scalar_lea.vmem [#allocation5], %s458
          %s460 = smul.u32 4, %s29
          %s462 = ssub.s32 1024, 1024
          %463 = vsyncadd %s456, %s462
          %s464 = smul.addr %s460, 2
          %s465 = smul.addr %s464, 128
          %s466 = scalar_lea.hbm %s1, %s465
          %s467 = sshll.u32 %s459, 4
          %s468 = int_to_ptr.vmem [resolvable:$true] %s467
          %473 = dma.hbm_to_vmem [thread:$0]  %s466, 1024, %s468, %s456, 256, 256, 16
        $region64: #{tpu_custom_call.1} parent=55 // pred_fallthru
          _
      $region56: #{tpu_custom_call.1} parent=5 // pred_fallthru
        _
      %p474 = scmp.le.s32.totalorder 1, %s29
      %p475 = scmp.lt.s32.totalorder %s29, 9
      %p476 = pnand %p474, %p475
      %p477 = pneg %p476
      // Predicated region
      $region65: #{tpu_custom_call.1} parent=5 // pred_check
        _
      $region66: #{tpu_custom_call.1} parent=5 // pred_check_branch
        %479 = sbr.rel (%p476) target = $region68
      $region67: #{tpu_custom_call.1} parent=5 // pred_region
        %s480 = ssub.s32 %s29, 1
        %s481 = sand.u32 %s42, 1
        %s482 = scalar_lea.sflag [#allocation3], %s481
        %s483 = sand.u32 %s42, 1
        %s484 = smul.addr %s483, 256
        %s485 = scalar_lea.vmem [#allocation2], %s484
        // Predicated region
        $region69: #{tpu_custom_call.1} parent=67 // pred_check
          %p486 = pneg %p55
        $region70: #{tpu_custom_call.1} parent=67 // pred_check_branch
          %488 = sbr.rel (%p486) target = $region72
        $region71: #{tpu_custom_call.1} parent=67 // pred_region
          %489 = dma.done %s482, 4096
        $region72: #{tpu_custom_call.1} parent=67 // pred_fallthru
          _
        %s490 = sand.u32 %s34, 1
        %s491 = scalar_lea.sflag [#allocation6], %s490
        %s492 = sand.u32 %s68, 1
        %s493 = smul.addr %s492, 64
        %s494 = scalar_lea.vmem [#allocation5], %s493
        // Predicated region
        $region73: #{tpu_custom_call.1} parent=67 // pred_check
          %p495 = pneg %p81
        $region74: #{tpu_custom_call.1} parent=67 // pred_check_branch
          %497 = sbr.rel (%p495) target = $region76
        $region75: #{tpu_custom_call.1} parent=67 // pred_region
          %498 = dma.done %s491, 1024
        $region76: #{tpu_custom_call.1} parent=67 // pred_fallthru
          _
        // Predicated region
        $region77: #{tpu_custom_call.1} parent=67 // pred_check
          %p499 = pneg %p144
        $region78: #{tpu_custom_call.1} parent=67 // pred_check_branch
          %501 = sbr.rel (%p499) target = $region80
        $region79: #{tpu_custom_call.1} parent=67 // pred_region
          %502 = dma.done [#allocation6], 1024
        $region80: #{tpu_custom_call.1} parent=67 // pred_fallthru
          _
        // Predicated region
        $region81: #{tpu_custom_call.1} parent=67 // pred_check
          %p503 = pneg %p186
        $region82: #{tpu_custom_call.1} parent=67 // pred_check_branch
          %505 = sbr.rel (%p503) target = $region84
        $region83: #{tpu_custom_call.1} parent=67 // pred_region
          %506 = dma.done [#allocation9], 1024
        $region84: #{tpu_custom_call.1} parent=67 // pred_fallthru
          _
        // Predicated region
        $region85: #{tpu_custom_call.1} parent=67 // pred_check
          %p507 = pneg %p228
        $region86: #{tpu_custom_call.1} parent=67 // pred_check_branch
          %509 = sbr.rel (%p507) target = $region88
        $region87: #{tpu_custom_call.1} parent=67 // pred_region
          %510 = dma.done [#allocation9], 1024
        $region88: #{tpu_custom_call.1} parent=67 // pred_fallthru
          _
        // Predicated region
        $region89: #{tpu_custom_call.1} parent=67 // pred_check
          %p511 = pneg %p270
        $region90: #{tpu_custom_call.1} parent=67 // pred_check_branch
          %513 = sbr.rel (%p511) target = $region92
        $region91: #{tpu_custom_call.1} parent=67 // pred_region
          %514 = dma.done [#allocation12], 1024
        $region92: #{tpu_custom_call.1} parent=67 // pred_fallthru
          _
        %s515 = sand.u32 %s42, 1
        %s516 = scalar_lea.sflag [#allocation3], %s515
        %s517 = sand.u32 %s42, 1
        %s518 = smul.addr %s517, 256
        %s519 = scalar_lea.vmem [#allocation2], %s518
        %p520 = pneg %p55
        %p521 = pneg %p52
        %s522 = sand.u32 %s34, 1
        %s523 = scalar_lea.sflag [#allocation6], %s522
        %s524 = sand.u32 %s68, 1
        %s525 = smul.addr %s524, 64
        %s526 = scalar_lea.vmem [#allocation5], %s525
        %p527 = pneg %p81
        %p528 = pneg %p78
        %p529 = pneg %p102
        %p530 = pneg %p99
        %p531 = pneg %p123
        %p532 = pneg %p120
        %p533 = pneg %p144
        %p534 = pneg %p141
        %p535 = pneg %p165
        %p536 = pneg %p162
        %p537 = pneg %p186
        %p538 = pneg %p183
        %p539 = pneg %p207
        %p540 = pneg %p204
        %p541 = pneg %p228
        %p542 = pneg %p225
        %p543 = pneg %p249
        %p544 = pneg %p246
        %p545 = pneg %p270
        %p546 = pneg %p267
        %p547 = pneg %p291
        %p548 = pneg %p288
        %p549 = pneg %p317
        %p550 = pneg %p314
        %s551 = sand.u32 %s304, 1
        %s552 = scalar_lea.sflag [#allocation4], %s551
        %s553 = sand.u32 %s304, 1
        %s554 = smul.addr %s553, 32
        %s555 = scalar_lea.vmem [#allocation13], %s554
        %s556 = smul.u32 4, %s34
        %s557 = smul.u32 4, %s34
        %s558 = smul.u32 4, %s34
        %v560 = vld [vmem:[%s494] sm:$0xff]
        %v561 = vld [vmem:[%s494 + $0x8] sm:$0xff]
        %v562 = vld [vmem:[%s494 + $0x10] sm:$0xff]
        %v563 = vld [vmem:[%s494 + $0x18] sm:$0xff]
        %v564 = vld [vmem:[%s494 + $0x20] sm:$0xff]
        %v565 = vld [vmem:[%s494 + $0x28] sm:$0xff]
        %v566 = vld [vmem:[%s494 + $0x30] sm:$0xff]
        %v567 = vld [vmem:[%s494 + $0x38] sm:$0xff]
        %v568 = vld [vmem:[%s2] sm:$0x1]
        %v569 = vld [vmem:[%s3] sm:$0x1]
        %v570 = vld [vmem:[#allocation7] sm:$0xf]
        %v571 = vld [vmem:[#allocation7 + $0x4] sm:$0xf]
        %v572 = vld [vmem:[#allocation7 + $0x8] sm:$0xf]
        %v573 = vld [vmem:[#allocation7 + $0xc] sm:$0xf]
        %v574 = vld [vmem:[#allocation7 + $0x10] sm:$0xf]
        %v575 = vld [vmem:[#allocation7 + $0x14] sm:$0xf]
        %v576 = vld [vmem:[#allocation7 + $0x18] sm:$0xf]
        %v577 = vld [vmem:[#allocation7 + $0x1c] sm:$0xf]
        %v578 = vld [vmem:[#allocation7 + $0x20] sm:$0xf]
        %v579 = vld [vmem:[#allocation7 + $0x24] sm:$0xf]
        %v580 = vld [vmem:[#allocation7 + $0x28] sm:$0xf]
        %v581 = vld [vmem:[#allocation7 + $0x2c] sm:$0xf]
        %v582 = vld [vmem:[#allocation7 + $0x30] sm:$0xf]
        %v583 = vld [vmem:[#allocation7 + $0x34] sm:$0xf]
        %v584 = vld [vmem:[#allocation7 + $0x38] sm:$0xf]
        %v585 = vld [vmem:[#allocation7 + $0x3c] sm:$0xf]
        %v586 = vld [vmem:[%s5] sm:$0x1]
        %v587 = vld [vmem:[%s485] sm:$0xf]
        %v588 = vld [vmem:[%s485 + $0x4] sm:$0xf]
        %v589 = vld [vmem:[%s485 + $0x8] sm:$0xf]
        %v590 = vld [vmem:[%s485 + $0xc] sm:$0xf]
        %s591 = scalar_lea.vmem %s485, 16 [#allocation2]
        %v592 = vld [vmem:[%s591] sm:$0xf]
        %v593 = vld [vmem:[%s591 + $0x4] sm:$0xf]
        %v594 = vld [vmem:[%s591 + $0x8] sm:$0xf]
        %v595 = vld [vmem:[%s591 + $0xc] sm:$0xf]
        %s596 = scalar_lea.vmem %s485, 32 [#allocation2]
        %v597 = vld [vmem:[%s596] sm:$0xf]
        %v598 = vld [vmem:[%s596 + $0x4] sm:$0xf]
        %v599 = vld [vmem:[%s596 + $0x8] sm:$0xf]
        %v600 = vld [vmem:[%s596 + $0xc] sm:$0xf]
        %s601 = scalar_lea.vmem %s485, 48 [#allocation2]
        %v602 = vld [vmem:[%s601] sm:$0xf]
        %v603 = vld [vmem:[%s601 + $0x4] sm:$0xf]
        %v604 = vld [vmem:[%s601 + $0x8] sm:$0xf]
        %v605 = vld [vmem:[%s601 + $0xc] sm:$0xf]
        %s606 = scalar_lea.vmem %s485, 64 [#allocation2]
        %v607 = vld [vmem:[%s606] sm:$0xf]
        %v608 = vld [vmem:[%s606 + $0x4] sm:$0xf]
        %v609 = vld [vmem:[%s606 + $0x8] sm:$0xf]
        %v610 = vld [vmem:[%s606 + $0xc] sm:$0xf]
        %s611 = scalar_lea.vmem %s485, 80 [#allocation2]
        %v612 = vld [vmem:[%s611] sm:$0xf]
        %v613 = vld [vmem:[%s611 + $0x4] sm:$0xf]
        %v614 = vld [vmem:[%s611 + $0x8] sm:$0xf]
        %v615 = vld [vmem:[%s611 + $0xc] sm:$0xf]
        %s616 = scalar_lea.vmem %s485, 96 [#allocation2]
        %v617 = vld [vmem:[%s616] sm:$0xf]
        %v618 = vld [vmem:[%s616 + $0x4] sm:$0xf]
        %v619 = vld [vmem:[%s616 + $0x8] sm:$0xf]
        %v620 = vld [vmem:[%s616 + $0xc] sm:$0xf]
        %s621 = scalar_lea.vmem %s485, 112 [#allocation2]
        %v622 = vld [vmem:[%s621] sm:$0xf]
        %v623 = vld [vmem:[%s621 + $0x4] sm:$0xf]
        %v624 = vld [vmem:[%s621 + $0x8] sm:$0xf]
        %v625 = vld [vmem:[%s621 + $0xc] sm:$0xf]
        %v626 = vadd.bf16 %v587, %v592
        %v627 = vadd.bf16 %v588, %v593
        %v628 = vadd.bf16 %v589, %v594
        %v629 = vadd.bf16 %v590, %v595
        %v630 = vadd.bf16 %v597, %v602
        %v631 = vadd.bf16 %v598, %v603
        %v632 = vadd.bf16 %v599, %v604
        %v633 = vadd.bf16 %v600, %v605
        %v634 = vadd.bf16 %v607, %v612
        %v635 = vadd.bf16 %v608, %v613
        %v636 = vadd.bf16 %v609, %v614
        %v637 = vadd.bf16 %v610, %v615
        %v638 = vadd.bf16 %v617, %v622
        %v639 = vadd.bf16 %v618, %v623
        %v640 = vadd.bf16 %v619, %v624
        %v641 = vadd.bf16 %v620, %v625
        %v642 = vadd.bf16 %v626, %v630
        %v643 = vadd.bf16 %v627, %v631
        %v644 = vadd.bf16 %v628, %v632
        %v645 = vadd.bf16 %v629, %v633
        %v646 = vadd.bf16 %v634, %v638
        %v647 = vadd.bf16 %v635, %v639
        %v648 = vadd.bf16 %v636, %v640
        %v649 = vadd.bf16 %v637, %v641
        %v650 = vadd.bf16 %v642, %v646
        %v651 = vadd.bf16 %v643, %v647
        %v652 = vadd.bf16 %v644, %v648
        %v653 = vadd.bf16 %v645, %v649
        %v654 = vunpack.c.l.bf16 %v650
        %v655 = vunpack.c.l.bf16 %v651
        %v656 = vunpack.c.l.bf16 %v652
        %v657 = vunpack.c.l.bf16 %v653
        %v658 = vadd.f32 %v654, %v560
        %v659 = vadd.f32 %v655, %v562
        %v660 = vadd.f32 %v656, %v564
        %v661 = vadd.f32 %v657, %v566
        %v663 = vlaneseq
        %v664 = vshrl.u32 %v663, 7
        %v665 = vsub.s32 0, %v664
        %v666 = vrot.slane %v568, %v665
        %v668 = vmul.f32 %v658, %v666
        %v669 = vmul.f32 %v659, %v666
        %v670 = vmul.f32 %v660, %v666
        %v671 = vmul.f32 %v661, %v666
        %v673 = vlaneseq
        %v674 = vshrl.u32 %v673, 7
        %v675 = vsub.s32 0, %v674
        %v676 = vrot.slane %v569, %v675
        %v678 = vadd.f32 %v668, %v676
        %v679 = vadd.f32 %v669, %v676
        %v680 = vadd.f32 %v670, %v676
        %v681 = vadd.f32 %v671, %v676
        %v682 = vmul.f32 %v678, %v678
        %v683 = vmul.f32 %v679, %v679
        %v684 = vmul.f32 %v680, %v680
        %v685 = vmul.f32 %v681, %v681
        %v686 = vmul.f32 %v678, %v682
        %v687 = vmul.f32 %v679, %v683
        %v688 = vmul.f32 %v680, %v684
        %v689 = vmul.f32 %v681, %v685
        %v690 = vmul.f32 %v686, 0.044715
        %v691 = vmul.f32 %v687, 0.044715
        %v692 = vmul.f32 %v688, 0.044715
        %v693 = vmul.f32 %v689, 0.044715
        %v694 = vadd.f32 %v678, %v690
        %v695 = vadd.f32 %v679, %v691
        %v696 = vadd.f32 %v680, %v692
        %v697 = vadd.f32 %v681, %v693
        %v698 = vmul.f32 %v694, 0.7978846
        %v699 = vmul.f32 %v695, 0.7978846
        %v700 = vmul.f32 %v696, 0.7978846
        %v701 = vmul.f32 %v697, 0.7978846
        %v702 = vtanh.pop %v698
        %v703 = vtanh.pop %v699
        %v704 = vtanh.pop %v700
        %v705 = vtanh.pop %v701
        %v706 = vadd.f32 %v702, 1.0
        %v707 = vadd.f32 %v703, 1.0
        %v708 = vadd.f32 %v704, 1.0
        %v709 = vadd.f32 %v705, 1.0
        %v710 = vmul.f32 %v706, 0.5
        %v711 = vmul.f32 %v707, 0.5
        %v712 = vmul.f32 %v708, 0.5
        %v713 = vmul.f32 %v709, 0.5
        %v714 = vmul.f32 %v678, %v710
        %v715 = vmul.f32 %v679, %v711
        %v716 = vmul.f32 %v680, %v712
        %v717 = vmul.f32 %v681, %v713
        %s718 = scalar_lea.vmem %s485, 128 [#allocation2]
        %v719 = vld [vmem:[%s718] sm:$0xf]
        %v720 = vld [vmem:[%s718 + $0x4] sm:$0xf]
        %v721 = vld [vmem:[%s718 + $0x8] sm:$0xf]
        %v722 = vld [vmem:[%s718 + $0xc] sm:$0xf]
        %s723 = scalar_lea.vmem %s485, 144 [#allocation2]
        %v724 = vld [vmem:[%s723] sm:$0xf]
        %v725 = vld [vmem:[%s723 + $0x4] sm:$0xf]
        %v726 = vld [vmem:[%s723 + $0x8] sm:$0xf]
        %v727 = vld [vmem:[%s723 + $0xc] sm:$0xf]
        %s728 = scalar_lea.vmem %s485, 160 [#allocation2]
        %v729 = vld [vmem:[%s728] sm:$0xf]
        %v730 = vld [vmem:[%s728 + $0x4] sm:$0xf]
        %v731 = vld [vmem:[%s728 + $0x8] sm:$0xf]
        %v732 = vld [vmem:[%s728 + $0xc] sm:$0xf]
        %s733 = scalar_lea.vmem %s485, 176 [#allocation2]
        %v734 = vld [vmem:[%s733] sm:$0xf]
        %v735 = vld [vmem:[%s733 + $0x4] sm:$0xf]
        %v736 = vld [vmem:[%s733 + $0x8] sm:$0xf]
        %v737 = vld [vmem:[%s733 + $0xc] sm:$0xf]
        %s738 = scalar_lea.vmem %s485, 192 [#allocation2]
        %v739 = vld [vmem:[%s738] sm:$0xf]
        %v740 = vld [vmem:[%s738 + $0x4] sm:$0xf]
        %v741 = vld [vmem:[%s738 + $0x8] sm:$0xf]
        %v742 = vld [vmem:[%s738 + $0xc] sm:$0xf]
        %s743 = scalar_lea.vmem %s485, 208 [#allocation2]
        %v744 = vld [vmem:[%s743] sm:$0xf]
        %v745 = vld [vmem:[%s743 + $0x4] sm:$0xf]
        %v746 = vld [vmem:[%s743 + $0x8] sm:$0xf]
        %v747 = vld [vmem:[%s743 + $0xc] sm:$0xf]
        %s748 = scalar_lea.vmem %s485, 224 [#allocation2]
        %v749 = vld [vmem:[%s748] sm:$0xf]
        %v750 = vld [vmem:[%s748 + $0x4] sm:$0xf]
        %v751 = vld [vmem:[%s748 + $0x8] sm:$0xf]
        %v752 = vld [vmem:[%s748 + $0xc] sm:$0xf]
        %s753 = scalar_lea.vmem %s485, 240 [#allocation2]
        %v754 = vld [vmem:[%s753] sm:$0xf]
        %v755 = vld [vmem:[%s753 + $0x4] sm:$0xf]
        %v756 = vld [vmem:[%s753 + $0x8] sm:$0xf]
        %v757 = vld [vmem:[%s753 + $0xc] sm:$0xf]
        %v758 = vadd.bf16 %v719, %v724
        %v759 = vadd.bf16 %v720, %v725
        %v760 = vadd.bf16 %v721, %v726
        %v761 = vadd.bf16 %v722, %v727
        %v762 = vadd.bf16 %v729, %v734
        %v763 = vadd.bf16 %v730, %v735
        %v764 = vadd.bf16 %v731, %v736
        %v765 = vadd.bf16 %v732, %v737
        %v766 = vadd.bf16 %v739, %v744
        %v767 = vadd.bf16 %v740, %v745
        %v768 = vadd.bf16 %v741, %v746
        %v769 = vadd.bf16 %v742, %v747
        %v770 = vadd.bf16 %v749, %v754
        %v771 = vadd.bf16 %v750, %v755
        %v772 = vadd.bf16 %v751, %v756
        %v773 = vadd.bf16 %v752, %v757
        %v774 = vadd.bf16 %v758, %v762
        %v775 = vadd.bf16 %v759, %v763
        %v776 = vadd.bf16 %v760, %v764
        %v777 = vadd.bf16 %v761, %v765
        %v778 = vadd.bf16 %v766, %v770
        %v779 = vadd.bf16 %v767, %v771
        %v780 = vadd.bf16 %v768, %v772
        %v781 = vadd.bf16 %v769, %v773
        %v782 = vadd.bf16 %v774, %v778
        %v783 = vadd.bf16 %v775, %v779
        %v784 = vadd.bf16 %v776, %v780
        %v785 = vadd.bf16 %v777, %v781
        %v786 = vunpack.c.l.bf16 %v782
        %v787 = vunpack.c.l.bf16 %v783
        %v788 = vunpack.c.l.bf16 %v784
        %v789 = vunpack.c.l.bf16 %v785
        %v790 = vadd.f32 %v786, %v561
        %v791 = vadd.f32 %v787, %v563
        %v792 = vadd.f32 %v788, %v565
        %v793 = vadd.f32 %v789, %v567
        %v794 = vmul.f32 %v790, %v666
        %v795 = vmul.f32 %v791, %v666
        %v796 = vmul.f32 %v792, %v666
        %v797 = vmul.f32 %v793, %v666
        %v798 = vadd.f32 %v794, %v676
        %v799 = vadd.f32 %v795, %v676
        %v800 = vadd.f32 %v796, %v676
        %v801 = vadd.f32 %v797, %v676
        %v802 = vmul.f32 %v798, %v798
        %v803 = vmul.f32 %v799, %v799
        %v804 = vmul.f32 %v800, %v800
        %v805 = vmul.f32 %v801, %v801
        %v806 = vmul.f32 %v798, %v802
        %v807 = vmul.f32 %v799, %v803
        %v808 = vmul.f32 %v800, %v804
        %v809 = vmul.f32 %v801, %v805
        %v810 = vmul.f32 %v806, 0.044715
        %v811 = vmul.f32 %v807, 0.044715
        %v812 = vmul.f32 %v808, 0.044715
        %v813 = vmul.f32 %v809, 0.044715
        %v814 = vadd.f32 %v798, %v810
        %v815 = vadd.f32 %v799, %v811
        %v816 = vadd.f32 %v800, %v812
        %v817 = vadd.f32 %v801, %v813
        %v818 = vmul.f32 %v814, 0.7978846
        %v819 = vmul.f32 %v815, 0.7978846
        %v820 = vmul.f32 %v816, 0.7978846
        %v821 = vmul.f32 %v817, 0.7978846
        %v822 = vtanh.pop %v818
        %v823 = vtanh.pop %v819
        %v824 = vtanh.pop %v820
        %v825 = vtanh.pop %v821
        %v826 = vadd.f32 %v822, 1.0
        %v827 = vadd.f32 %v823, 1.0
        %v828 = vadd.f32 %v824, 1.0
        %v829 = vadd.f32 %v825, 1.0
        %v830 = vmul.f32 %v826, 0.5
        %v831 = vmul.f32 %v827, 0.5
        %v832 = vmul.f32 %v828, 0.5
        %v833 = vmul.f32 %v829, 0.5
        %v834 = vmul.f32 %v798, %v830
        %v835 = vmul.f32 %v799, %v831
        %v836 = vmul.f32 %v800, %v832
        %v837 = vmul.f32 %v801, %v833
        %v838 = vpack.c.bf16 %v715, %v714
        %v839 = vpack.c.bf16 %v717, %v716
        %v840 = vpack.c.bf16 %v835, %v834
        %v841 = vpack.c.bf16 %v837, %v836
        %v843 = vlaneseq
        %v844 = vshrl.u32 %v843, 7
        %v845 = vsub.s32 0, %v844
        %v846 = vrot.slane %v586, %v845
        %v864 = vunpack.c.l.b16 %v570
        %v865 = vunpack.c.l.b16 %v571
        %v866 = vunpack.c.l.b16 %v572
        %v867 = vunpack.c.l.b16 %v573
        %v868 = vunpack.c.l.b16 %v574
        %v869 = vunpack.c.l.b16 %v575
        %v870 = vunpack.c.l.b16 %v576
        %v871 = vunpack.c.l.b16 %v577
        %v872 = vunpack.c.l.b16 %v578
        %v873 = vunpack.c.l.b16 %v579
        %v874 = vunpack.c.l.b16 %v580
        %v875 = vunpack.c.l.b16 %v581
        %v876 = vunpack.c.l.b16 %v582
        %v877 = vunpack.c.l.b16 %v583
        %v878 = vunpack.c.l.b16 %v584
        %v879 = vunpack.c.l.b16 %v585
        %v880 = vpack.c.b16 %v865, %v864
        %v881 = vpack.c.b16 %v867, %v866
        %v882 = vpack.c.b16 %v869, %v868
        %v883 = vpack.c.b16 %v871, %v870
        %v884 = vpack.c.b16 %v873, %v872
        %v885 = vpack.c.b16 %v875, %v874
        %v886 = vpack.c.b16 %v877, %v876
        %v887 = vpack.c.b16 %v879, %v878
        %896 = vmatprep.subr.bf16.mxu0 0
        %897 = vmatpush1.bf16.msra.mxu0 %v880
        %898 = vmatprep.subr.bf16.mxu0 0
        %899 = vmatpush1.bf16.msra.mxu0 %v881
        %900 = vmatprep.subr.bf16.mxu0 0
        %901 = vmatpush1.bf16.msra.mxu0 %v882
        %902 = vmatprep.subr.bf16.mxu0 0
        %903 = vmatpush1.bf16.msra.mxu0 %v883
        %904 = vmatprep.subr.bf16.mxu0 0
        %905 = vmatpush1.bf16.msra.mxu0 %v884
        %906 = vmatprep.subr.bf16.mxu0 0
        %907 = vmatpush1.bf16.msra.mxu0 %v885
        %908 = vmatprep.subr.bf16.mxu0 0
        %909 = vmatpush1.bf16.msra.mxu0 %v886
        %910 = vmatprep.subr.bf16.mxu0 0
        %911 = vmatpush1.bf16.msra.mxu0 %v887
        %912 = vmatprep.subr.bf16.mxu0 0
        %913 = vmatpush1.bf16.msra.mxu0 0
        %914 = vmatprep.subr.bf16.mxu0 0
        %915 = vmatpush1.bf16.msra.mxu0 0
        %916 = vmatprep.subr.bf16.mxu0 0
        %917 = vmatpush1.bf16.msra.mxu0 0
        %918 = vmatprep.subr.bf16.mxu0 0
        %919 = vmatpush1.bf16.msra.mxu0 0
        %920 = vmatprep.subr.bf16.mxu0 0
        %921 = vmatpush1.bf16.msra.mxu0 0
        %922 = vmatprep.subr.bf16.mxu0 0
        %923 = vmatpush1.bf16.msra.mxu0 0
        %924 = vmatprep.subr.bf16.mxu0 0
        %925 = vmatpush1.bf16.msra.mxu0 0
        %926 = vmatprep.subr.bf16.mxu0 0
        %927 = vmatpush1.bf16.msra.mxu0 0
        %928 = vmatprep.mubr.bf16.mxu0 0
        %929 = vmatmul.mubr.bf16.gmra.mrb[0].mxu0 %v838
        %v930 = vpop.f32.mrb[0].mxu0
        %v931 = vadd.f32 %v846, %v930
        %v932 = vpop.f32.mrb[0].mxu0
        %v933 = vpop.f32.mrb[0].mxu0
        %v934 = vadd.f32 %v846, %v933
        %v935 = vpop.f32.mrb[0].mxu0
        %936 = vmatprep.mubr.bf16.mxu0 0
        %937 = vmatmul.mubr.bf16.gmra.mrb[0].mxu0 %v839
        %v938 = vpop.f32.mrb[0].mxu0
        %v939 = vadd.f32 %v846, %v938
        %v940 = vpop.f32.mrb[0].mxu0
        %v941 = vpop.f32.mrb[0].mxu0
        %v942 = vadd.f32 %v846, %v941
        %v943 = vpop.f32.mrb[0].mxu0
        %944 = vmatprep.mubr.bf16.mxu0 0
        %945 = vmatmul.mubr.bf16.gmra.mrb[0].mxu0 %v840
        %v946 = vpop.f32.mrb[0].mxu0
        %v947 = vadd.f32 %v846, %v946
        %v948 = vpop.f32.mrb[0].mxu0
        %v949 = vpop.f32.mrb[0].mxu0
        %v950 = vadd.f32 %v846, %v949
        %v951 = vpop.f32.mrb[0].mxu0
        %952 = vmatprep.mubr.bf16.mxu0 0
        %953 = vmatmul.mubr.bf16.gmra.mrb[0].mxu0 %v841
        %v954 = vpop.f32.mrb[0].mxu0
        %v955 = vadd.f32 %v846, %v954
        %v956 = vpop.f32.mrb[0].mxu0
        %v957 = vpop.f32.mrb[0].mxu0
        %v958 = vadd.f32 %v846, %v957
        %v959 = vpop.f32.mrb[0].mxu0
        %960 = vdwg.mxu0
        %v961 = vmul.f32 %v931, %v931
        %v962 = vmul.f32 %v934, %v934
        %v963 = vmul.f32 %v939, %v939
        %v964 = vmul.f32 %v942, %v942
        %v965 = vmul.f32 %v947, %v947
        %v966 = vmul.f32 %v950, %v950
        %v967 = vmul.f32 %v955, %v955
        %v968 = vmul.f32 %v958, %v958
        %v969 = vmul.f32 %v931, %v961
        %v970 = vmul.f32 %v934, %v962
        %v971 = vmul.f32 %v939, %v963
        %v972 = vmul.f32 %v942, %v964
        %v973 = vmul.f32 %v947, %v965
        %v974 = vmul.f32 %v950, %v966
        %v975 = vmul.f32 %v955, %v967
        %v976 = vmul.f32 %v958, %v968
        %v977 = vmul.f32 %v969, 0.044715
        %v978 = vmul.f32 %v970, 0.044715
        %v979 = vmul.f32 %v971, 0.044715
        %v980 = vmul.f32 %v972, 0.044715
        %v981 = vmul.f32 %v973, 0.044715
        %v982 = vmul.f32 %v974, 0.044715
        %v983 = vmul.f32 %v975, 0.044715
        %v984 = vmul.f32 %v976, 0.044715
        %v985 = vadd.f32 %v931, %v977
        %v986 = vadd.f32 %v934, %v978
        %v987 = vadd.f32 %v939, %v979
        %v988 = vadd.f32 %v942, %v980
        %v989 = vadd.f32 %v947, %v981
        %v990 = vadd.f32 %v950, %v982
        %v991 = vadd.f32 %v955, %v983
        %v992 = vadd.f32 %v958, %v984
        %v993 = vmul.f32 %v985, 0.7978846
        %v994 = vmul.f32 %v986, 0.7978846
        %v995 = vmul.f32 %v987, 0.7978846
        %v996 = vmul.f32 %v988, 0.7978846
        %v997 = vmul.f32 %v989, 0.7978846
        %v998 = vmul.f32 %v990, 0.7978846
        %v999 = vmul.f32 %v991, 0.7978846
        %v1000 = vmul.f32 %v992, 0.7978846
        %v1001 = vtanh.pop %v993
        %v1002 = vtanh.pop %v994
        %v1003 = vtanh.pop %v995
        %v1004 = vtanh.pop %v996
        %v1005 = vtanh.pop %v997
        %v1006 = vtanh.pop %v998
        %v1007 = vtanh.pop %v999
        %v1008 = vtanh.pop %v1000
        %v1009 = vadd.f32 %v1001, 1.0
        %v1010 = vadd.f32 %v1002, 1.0
        %v1011 = vadd.f32 %v1003, 1.0
        %v1012 = vadd.f32 %v1004, 1.0
        %v1013 = vadd.f32 %v1005, 1.0
        %v1014 = vadd.f32 %v1006, 1.0
        %v1015 = vadd.f32 %v1007, 1.0
        %v1016 = vadd.f32 %v1008, 1.0
        %v1017 = vmul.f32 %v1009, 0.5
        %v1018 = vmul.f32 %v1010, 0.5
        %v1019 = vmul.f32 %v1011, 0.5
        %v1020 = vmul.f32 %v1012, 0.5
        %v1021 = vmul.f32 %v1013, 0.5
        %v1022 = vmul.f32 %v1014, 0.5
        %v1023 = vmul.f32 %v1015, 0.5
        %v1024 = vmul.f32 %v1016, 0.5
        %v1025 = vmul.f32 %v931, %v1017
        %v1026 = vmul.f32 %v934, %v1018
        %v1027 = vmul.f32 %v939, %v1019
        %v1028 = vmul.f32 %v942, %v1020
        %v1029 = vmul.f32 %v947, %v1021
        %v1030 = vmul.f32 %v950, %v1022
        %v1031 = vmul.f32 %v955, %v1023
        %v1032 = vmul.f32 %v958, %v1024
        %v1033 = vld [vmem:[#allocation8] sm:$0xf]
        %v1034 = vld [vmem:[#allocation8 + $0x4] sm:$0xf]
        %v1035 = vld [vmem:[#allocation8 + $0x8] sm:$0xf]
        %v1036 = vld [vmem:[#allocation8 + $0xc] sm:$0xf]
        %v1037 = vld [vmem:[#allocation8 + $0x10] sm:$0xf]
        %v1038 = vld [vmem:[#allocation8 + $0x14] sm:$0xf]
        %v1039 = vld [vmem:[#allocation8 + $0x18] sm:$0xf]
        %v1040 = vld [vmem:[#allocation8 + $0x1c] sm:$0xf]
        %v1041 = vld [vmem:[#allocation8 + $0x20] sm:$0xf]
        %v1042 = vld [vmem:[#allocation8 + $0x24] sm:$0xf]
        %v1043 = vld [vmem:[#allocation8 + $0x28] sm:$0xf]
        %v1044 = vld [vmem:[#allocation8 + $0x2c] sm:$0xf]
        %v1045 = vld [vmem:[#allocation8 + $0x30] sm:$0xf]
        %v1046 = vld [vmem:[#allocation8 + $0x34] sm:$0xf]
        %v1047 = vld [vmem:[#allocation8 + $0x38] sm:$0xf]
        %v1048 = vld [vmem:[#allocation8 + $0x3c] sm:$0xf]
        %v1049 = vld [vmem:[%s7] sm:$0x1]
        %v1050 = vld [vmem:[#allocation10] sm:$0xf]
        %v1051 = vld [vmem:[#allocation10 + $0x4] sm:$0xf]
        %v1052 = vld [vmem:[#allocation10 + $0x8] sm:$0xf]
        %v1053 = vld [vmem:[#allocation10 + $0xc] sm:$0xf]
        %v1054 = vld [vmem:[#allocation10 + $0x10] sm:$0xf]
        %v1055 = vld [vmem:[#allocation10 + $0x14] sm:$0xf]
        %v1056 = vld [vmem:[#allocation10 + $0x18] sm:$0xf]
        %v1057 = vld [vmem:[#allocation10 + $0x1c] sm:$0xf]
        %v1058 = vld [vmem:[#allocation10 + $0x20] sm:$0xf]
        %v1059 = vld [vmem:[#allocation10 + $0x24] sm:$0xf]
        %v1060 = vld [vmem:[#allocation10 + $0x28] sm:$0xf]
        %v1061 = vld [vmem:[#allocation10 + $0x2c] sm:$0xf]
        %v1062 = vld [vmem:[#allocation10 + $0x30] sm:$0xf]
        %v1063 = vld [vmem:[#allocation10 + $0x34] sm:$0xf]
        %v1064 = vld [vmem:[#allocation10 + $0x38] sm:$0xf]
        %v1065 = vld [vmem:[#allocation10 + $0x3c] sm:$0xf]
        %v1066 = vld [vmem:[%s9] sm:$0x1]
        %1067 = vrot.lane.b32.xlu0 %v1025, 32
        %v1068 = vpop.permute.xlu0 %1067
        %1069 = vrot.lane.b32.xlu0 %v1026, 32
        %v1070 = vpop.permute.xlu0 %1069
        %1071 = vrot.lane.b32.xlu0 %v1027, 32
        %v1072 = vpop.permute.xlu0 %1071
        %1073 = vrot.lane.b32.xlu0 %v1028, 32
        %v1074 = vpop.permute.xlu0 %1073
        %1075 = vrot.lane.b32.xlu0 %v1025, 64
        %v1076 = vpop.permute.xlu0 %1075
        %1077 = vrot.lane.b32.xlu0 %v1026, 64
        %v1078 = vpop.permute.xlu0 %1077
        %1079 = vrot.lane.b32.xlu0 %v1027, 64
        %v1080 = vpop.permute.xlu0 %1079
        %1081 = vrot.lane.b32.xlu0 %v1028, 64
        %v1082 = vpop.permute.xlu0 %1081
        %1083 = vrot.lane.b32.xlu0 %v1025, 96
        %v1084 = vpop.permute.xlu0 %1083
        %1085 = vrot.lane.b32.xlu0 %v1026, 96
        %v1086 = vpop.permute.xlu0 %1085
        %1087 = vrot.lane.b32.xlu0 %v1027, 96
        %v1088 = vpop.permute.xlu0 %1087
        %1089 = vrot.lane.b32.xlu0 %v1028, 96
        %v1090 = vpop.permute.xlu0 %1089
        %1091 = vrot.lane.b32.xlu0 %v1029, 32
        %v1092 = vpop.permute.xlu0 %1091
        %1093 = vrot.lane.b32.xlu0 %v1030, 32
        %v1094 = vpop.permute.xlu0 %1093
        %1095 = vrot.lane.b32.xlu0 %v1031, 32
        %v1096 = vpop.permute.xlu0 %1095
        %1097 = vrot.lane.b32.xlu0 %v1032, 32
        %v1098 = vpop.permute.xlu0 %1097
        %1099 = vrot.lane.b32.xlu0 %v1029, 64
        %v1100 = vpop.permute.xlu0 %1099
        %1101 = vrot.lane.b32.xlu0 %v1030, 64
        %v1102 = vpop.permute.xlu0 %1101
        %1103 = vrot.lane.b32.xlu0 %v1031, 64
        %v1104 = vpop.permute.xlu0 %1103
        %1105 = vrot.lane.b32.xlu0 %v1032, 64
        %v1106 = vpop.permute.xlu0 %1105
        %1107 = vrot.lane.b32.xlu0 %v1029, 96
        %v1108 = vpop.permute.xlu0 %1107
        %1109 = vrot.lane.b32.xlu0 %v1030, 96
        %v1110 = vpop.permute.xlu0 %1109
        %1111 = vrot.lane.b32.xlu0 %v1031, 96
        %v1112 = vpop.permute.xlu0 %1111
        %1113 = vrot.lane.b32.xlu0 %v1032, 96
        %v1114 = vpop.permute.xlu0 %1113
        %v1115 = vunpack.c.l.bf16 %v587
        %v1116 = vunpack.c.l.bf16 %v588
        %v1117 = vunpack.c.l.bf16 %v589
        %v1118 = vunpack.c.l.bf16 %v590
        %v1119 = vmul.f32 %v1115, %v1025
        %v1120 = vmul.f32 %v1116, %v1026
        %v1121 = vmul.f32 %v1117, %v1027
        %v1122 = vmul.f32 %v1118, %v1028
        %v1123 = vunpack.c.l.bf16 %v592
        %v1124 = vunpack.c.l.bf16 %v593
        %v1125 = vunpack.c.l.bf16 %v594
        %v1126 = vunpack.c.l.bf16 %v595
        %v1127 = vmul.f32 %v1123, %v1068
        %v1128 = vmul.f32 %v1124, %v1070
        %v1129 = vmul.f32 %v1125, %v1072
        %v1130 = vmul.f32 %v1126, %v1074
        %v1131 = vunpack.c.l.bf16 %v597
        %v1132 = vunpack.c.l.bf16 %v598
        %v1133 = vunpack.c.l.bf16 %v599
        %v1134 = vunpack.c.l.bf16 %v600
        %v1135 = vmul.f32 %v1131, %v1076
        %v1136 = vmul.f32 %v1132, %v1078
        %v1137 = vmul.f32 %v1133, %v1080
        %v1138 = vmul.f32 %v1134, %v1082
        %v1139 = vunpack.c.l.bf16 %v602
        %v1140 = vunpack.c.l.bf16 %v603
        %v1141 = vunpack.c.l.bf16 %v604
        %v1142 = vunpack.c.l.bf16 %v605
        %v1143 = vmul.f32 %v1139, %v1084
        %v1144 = vmul.f32 %v1140, %v1086
        %v1145 = vmul.f32 %v1141, %v1088
        %v1146 = vmul.f32 %v1142, %v1090
        %v1147 = vunpack.c.l.bf16 %v607
        %v1148 = vunpack.c.l.bf16 %v608
        %v1149 = vunpack.c.l.bf16 %v609
        %v1150 = vunpack.c.l.bf16 %v610
        %v1151 = vmul.f32 %v1147, %v1029
        %v1152 = vmul.f32 %v1148, %v1030
        %v1153 = vmul.f32 %v1149, %v1031
        %v1154 = vmul.f32 %v1150, %v1032
        %v1155 = vunpack.c.l.bf16 %v612
        %v1156 = vunpack.c.l.bf16 %v613
        %v1157 = vunpack.c.l.bf16 %v614
        %v1158 = vunpack.c.l.bf16 %v615
        %v1159 = vmul.f32 %v1155, %v1092
        %v1160 = vmul.f32 %v1156, %v1094
        %v1161 = vmul.f32 %v1157, %v1096
        %v1162 = vmul.f32 %v1158, %v1098
        %v1163 = vunpack.c.l.bf16 %v617
        %v1164 = vunpack.c.l.bf16 %v618
        %v1165 = vunpack.c.l.bf16 %v619
        %v1166 = vunpack.c.l.bf16 %v620
        %v1167 = vmul.f32 %v1163, %v1100
        %v1168 = vmul.f32 %v1164, %v1102
        %v1169 = vmul.f32 %v1165, %v1104
        %v1170 = vmul.f32 %v1166, %v1106
        %v1171 = vunpack.c.l.bf16 %v622
        %v1172 = vunpack.c.l.bf16 %v623
        %v1173 = vunpack.c.l.bf16 %v624
        %v1174 = vunpack.c.l.bf16 %v625
        %v1175 = vmul.f32 %v1171, %v1108
        %v1176 = vmul.f32 %v1172, %v1110
        %v1177 = vmul.f32 %v1173, %v1112
        %v1178 = vmul.f32 %v1174, %v1114
        %v1179 = vadd.f32 %v1119, %v1127
        %v1180 = vadd.f32 %v1120, %v1128
        %v1181 = vadd.f32 %v1121, %v1129
        %v1182 = vadd.f32 %v1122, %v1130
        %v1183 = vadd.f32 %v1135, %v1143
        %v1184 = vadd.f32 %v1136, %v1144
        %v1185 = vadd.f32 %v1137, %v1145
        %v1186 = vadd.f32 %v1138, %v1146
        %v1187 = vadd.f32 %v1151, %v1159
        %v1188 = vadd.f32 %v1152, %v1160
        %v1189 = vadd.f32 %v1153, %v1161
        %v1190 = vadd.f32 %v1154, %v1162
        %v1191 = vadd.f32 %v1167, %v1175
        %v1192 = vadd.f32 %v1168, %v1176
        %v1193 = vadd.f32 %v1169, %v1177
        %v1194 = vadd.f32 %v1170, %v1178
        %v1195 = vadd.f32 %v1179, %v1183
        %v1196 = vadd.f32 %v1180, %v1184
        %v1197 = vadd.f32 %v1181, %v1185
        %v1198 = vadd.f32 %v1182, %v1186
        %v1199 = vadd.f32 %v1187, %v1191
        %v1200 = vadd.f32 %v1188, %v1192
        %v1201 = vadd.f32 %v1189, %v1193
        %v1202 = vadd.f32 %v1190, %v1194
        %v1203 = vadd.f32 %v1195, %v1199
        %v1204 = vadd.f32 %v1196, %v1200
        %v1205 = vadd.f32 %v1197, %v1201
        %v1206 = vadd.f32 %v1198, %v1202
        %v1207 = vadd.f32 %v1025, %v1203
        %v1208 = vadd.f32 %v1026, %v1204
        %v1209 = vadd.f32 %v1027, %v1205
        %v1210 = vadd.f32 %v1028, %v1206
        %v1211 = vunpack.c.l.bf16 %v719
        %v1212 = vunpack.c.l.bf16 %v720
        %v1213 = vunpack.c.l.bf16 %v721
        %v1214 = vunpack.c.l.bf16 %v722
        %v1215 = vmul.f32 %v1211, %v1025
        %v1216 = vmul.f32 %v1212, %v1026
        %v1217 = vmul.f32 %v1213, %v1027
        %v1218 = vmul.f32 %v1214, %v1028
        %v1219 = vunpack.c.l.bf16 %v724
        %v1220 = vunpack.c.l.bf16 %v725
        %v1221 = vunpack.c.l.bf16 %v726
        %v1222 = vunpack.c.l.bf16 %v727
        %v1223 = vmul.f32 %v1219, %v1068
        %v1224 = vmul.f32 %v1220, %v1070
        %v1225 = vmul.f32 %v1221, %v1072
        %v1226 = vmul.f32 %v1222, %v1074
        %v1227 = vunpack.c.l.bf16 %v729
        %v1228 = vunpack.c.l.bf16 %v730
        %v1229 = vunpack.c.l.bf16 %v731
        %v1230 = vunpack.c.l.bf16 %v732
        %v1231 = vmul.f32 %v1227, %v1076
        %v1232 = vmul.f32 %v1228, %v1078
        %v1233 = vmul.f32 %v1229, %v1080
        %v1234 = vmul.f32 %v1230, %v1082
        %v1235 = vunpack.c.l.bf16 %v734
        %v1236 = vunpack.c.l.bf16 %v735
        %v1237 = vunpack.c.l.bf16 %v736
        %v1238 = vunpack.c.l.bf16 %v737
        %v1239 = vmul.f32 %v1235, %v1084
        %v1240 = vmul.f32 %v1236, %v1086
        %v1241 = vmul.f32 %v1237, %v1088
        %v1242 = vmul.f32 %v1238, %v1090
        %v1243 = vunpack.c.l.bf16 %v739
        %v1244 = vunpack.c.l.bf16 %v740
        %v1245 = vunpack.c.l.bf16 %v741
        %v1246 = vunpack.c.l.bf16 %v742
        %v1247 = vmul.f32 %v1243, %v1029
        %v1248 = vmul.f32 %v1244, %v1030
        %v1249 = vmul.f32 %v1245, %v1031
        %v1250 = vmul.f32 %v1246, %v1032
        %v1251 = vunpack.c.l.bf16 %v744
        %v1252 = vunpack.c.l.bf16 %v745
        %v1253 = vunpack.c.l.bf16 %v746
        %v1254 = vunpack.c.l.bf16 %v747
        %v1255 = vmul.f32 %v1251, %v1092
        %v1256 = vmul.f32 %v1252, %v1094
        %v1257 = vmul.f32 %v1253, %v1096
        %v1258 = vmul.f32 %v1254, %v1098
        %v1259 = vunpack.c.l.bf16 %v749
        %v1260 = vunpack.c.l.bf16 %v750
        %v1261 = vunpack.c.l.bf16 %v751
        %v1262 = vunpack.c.l.bf16 %v752
        %v1263 = vmul.f32 %v1259, %v1100
        %v1264 = vmul.f32 %v1260, %v1102
        %v1265 = vmul.f32 %v1261, %v1104
        %v1266 = vmul.f32 %v1262, %v1106
        %v1267 = vunpack.c.l.bf16 %v754
        %v1268 = vunpack.c.l.bf16 %v755
        %v1269 = vunpack.c.l.bf16 %v756
        %v1270 = vunpack.c.l.bf16 %v757
        %v1271 = vmul.f32 %v1267, %v1108
        %v1272 = vmul.f32 %v1268, %v1110
        %v1273 = vmul.f32 %v1269, %v1112
        %v1274 = vmul.f32 %v1270, %v1114
        %v1275 = vadd.f32 %v1215, %v1223
        %v1276 = vadd.f32 %v1216, %v1224
        %v1277 = vadd.f32 %v1217, %v1225
        %v1278 = vadd.f32 %v1218, %v1226
        %v1279 = vadd.f32 %v1231, %v1239
        %v1280 = vadd.f32 %v1232, %v1240
        %v1281 = vadd.f32 %v1233, %v1241
        %v1282 = vadd.f32 %v1234, %v1242
        %v1283 = vadd.f32 %v1247, %v1255
        %v1284 = vadd.f32 %v1248, %v1256
        %v1285 = vadd.f32 %v1249, %v1257
        %v1286 = vadd.f32 %v1250, %v1258
        %v1287 = vadd.f32 %v1263, %v1271
        %v1288 = vadd.f32 %v1264, %v1272
        %v1289 = vadd.f32 %v1265, %v1273
        %v1290 = vadd.f32 %v1266, %v1274
        %v1291 = vadd.f32 %v1275, %v1279
        %v1292 = vadd.f32 %v1276, %v1280
        %v1293 = vadd.f32 %v1277, %v1281
        %v1294 = vadd.f32 %v1278, %v1282
        %v1295 = vadd.f32 %v1283, %v1287
        %v1296 = vadd.f32 %v1284, %v1288
        %v1297 = vadd.f32 %v1285, %v1289
        %v1298 = vadd.f32 %v1286, %v1290
        %v1299 = vadd.f32 %v1291, %v1295
        %v1300 = vadd.f32 %v1292, %v1296
        %v1301 = vadd.f32 %v1293, %v1297
        %v1302 = vadd.f32 %v1294, %v1298
        %v1303 = vadd.f32 %v1029, %v1299
        %v1304 = vadd.f32 %v1030, %v1300
        %v1305 = vadd.f32 %v1031, %v1301
        %v1306 = vadd.f32 %v1032, %v1302
        %v1307 = vpack.c.bf16 %v1208, %v1207
        %v1308 = vpack.c.bf16 %v1210, %v1209
        %v1309 = vpack.c.bf16 %v1304, %v1303
        %v1310 = vpack.c.bf16 %v1306, %v1305
        %v1312 = vlaneseq
        %v1313 = vshrl.u32 %v1312, 7
        %v1314 = vsub.s32 0, %v1313
        %v1315 = vrot.slane %v1049, %v1314
        %v1333 = vunpack.c.l.b16 %v1033
        %v1334 = vunpack.c.l.b16 %v1034
        %v1335 = vunpack.c.l.b16 %v1035
        %v1336 = vunpack.c.l.b16 %v1036
        %v1337 = vunpack.c.l.b16 %v1037
        %v1338 = vunpack.c.l.b16 %v1038
        %v1339 = vunpack.c.l.b16 %v1039
        %v1340 = vunpack.c.l.b16 %v1040
        %v1341 = vunpack.c.l.b16 %v1041
        %v1342 = vunpack.c.l.b16 %v1042
        %v1343 = vunpack.c.l.b16 %v1043
        %v1344 = vunpack.c.l.b16 %v1044
        %v1345 = vunpack.c.l.b16 %v1045
        %v1346 = vunpack.c.l.b16 %v1046
        %v1347 = vunpack.c.l.b16 %v1047
        %v1348 = vunpack.c.l.b16 %v1048
        %v1349 = vpack.c.b16 %v1334, %v1333
        %v1350 = vpack.c.b16 %v1336, %v1335
        %v1351 = vpack.c.b16 %v1338, %v1337
        %v1352 = vpack.c.b16 %v1340, %v1339
        %v1353 = vpack.c.b16 %v1342, %v1341
        %v1354 = vpack.c.b16 %v1344, %v1343
        %v1355 = vpack.c.b16 %v1346, %v1345
        %v1356 = vpack.c.b16 %v1348, %v1347
        %1365 = vmatprep.subr.bf16.mxu0 0
        %1366 = vmatpush1.bf16.msra.mxu0 %v1349
        %1367 = vmatprep.subr.bf16.mxu0 0
        %1368 = vmatpush1.bf16.msra.mxu0 %v1350
        %1369 = vmatprep.subr.bf16.mxu0 0
        %1370 = vmatpush1.bf16.msra.mxu0 %v1351
        %1371 = vmatprep.subr.bf16.mxu0 0
        %1372 = vmatpush1.bf16.msra.mxu0 %v1352
        %1373 = vmatprep.subr.bf16.mxu0 0
        %1374 = vmatpush1.bf16.msra.mxu0 %v1353
        %1375 = vmatprep.subr.bf16.mxu0 0
        %1376 = vmatpush1.bf16.msra.mxu0 %v1354
        %1377 = vmatprep.subr.bf16.mxu0 0
        %1378 = vmatpush1.bf16.msra.mxu0 %v1355
        %1379 = vmatprep.subr.bf16.mxu0 0
        %1380 = vmatpush1.bf16.msra.mxu0 %v1356
        %1381 = vmatprep.subr.bf16.mxu0 0
        %1382 = vmatpush1.bf16.msra.mxu0 0
        %1383 = vmatprep.subr.bf16.mxu0 0
        %1384 = vmatpush1.bf16.msra.mxu0 0
        %1385 = vmatprep.subr.bf16.mxu0 0
        %1386 = vmatpush1.bf16.msra.mxu0 0
        %1387 = vmatprep.subr.bf16.mxu0 0
        %1388 = vmatpush1.bf16.msra.mxu0 0
        %1389 = vmatprep.subr.bf16.mxu0 0
        %1390 = vmatpush1.bf16.msra.mxu0 0
        %1391 = vmatprep.subr.bf16.mxu0 0
        %1392 = vmatpush1.bf16.msra.mxu0 0
        %1393 = vmatprep.subr.bf16.mxu0 0
        %1394 = vmatpush1.bf16.msra.mxu0 0
        %1395 = vmatprep.subr.bf16.mxu0 0
        %1396 = vmatpush1.bf16.msra.mxu0 0
        %1397 = vmatprep.mubr.bf16.mxu0 0
        %1398 = vmatmul.mubr.bf16.gmra.mrb[0].mxu0 %v1307
        %v1399 = vpop.f32.mrb[0].mxu0
        %v1400 = vadd.f32 %v1315, %v1399
        %v1401 = vpop.f32.mrb[0].mxu0
        %v1402 = vpop.f32.mrb[0].mxu0
        %v1403 = vadd.f32 %v1315, %v1402
        %v1404 = vpop.f32.mrb[0].mxu0
        %1405 = vmatprep.mubr.bf16.mxu0 0
        %1406 = vmatmul.mubr.bf16.gmra.mrb[0].mxu0 %v1308
        %v1407 = vpop.f32.mrb[0].mxu0
        %v1408 = vadd.f32 %v1315, %v1407
        %v1409 = vpop.f32.mrb[0].mxu0
        %v1410 = vpop.f32.mrb[0].mxu0
        %v1411 = vadd.f32 %v1315, %v1410
        %v1412 = vpop.f32.mrb[0].mxu0
        %1413 = vmatprep.mubr.bf16.mxu0 0
        %1414 = vmatmul.mubr.bf16.gmra.mrb[0].mxu0 %v1309
        %v1415 = vpop.f32.mrb[0].mxu0
        %v1416 = vadd.f32 %v1315, %v1415
        %v1417 = vpop.f32.mrb[0].mxu0
        %v1418 = vpop.f32.mrb[0].mxu0
        %v1419 = vadd.f32 %v1315, %v1418
        %v1420 = vpop.f32.mrb[0].mxu0
        %1421 = vmatprep.mubr.bf16.mxu0 0
        %1422 = vmatmul.mubr.bf16.gmra.mrb[0].mxu0 %v1310
        %v1423 = vpop.f32.mrb[0].mxu0
        %v1424 = vadd.f32 %v1315, %v1423
        %v1425 = vpop.f32.mrb[0].mxu0
        %v1426 = vpop.f32.mrb[0].mxu0
        %v1427 = vadd.f32 %v1315, %v1426
        %v1428 = vpop.f32.mrb[0].mxu0
        %1429 = vdwg.mxu0
        %v1430 = vmul.f32 %v1400, %v1400
        %v1431 = vmul.f32 %v1403, %v1403
        %v1432 = vmul.f32 %v1408, %v1408
        %v1433 = vmul.f32 %v1411, %v1411
        %v1434 = vmul.f32 %v1416, %v1416
        %v1435 = vmul.f32 %v1419, %v1419
        %v1436 = vmul.f32 %v1424, %v1424
        %v1437 = vmul.f32 %v1427, %v1427
        %v1438 = vmul.f32 %v1400, %v1430
        %v1439 = vmul.f32 %v1403, %v1431
        %v1440 = vmul.f32 %v1408, %v1432
        %v1441 = vmul.f32 %v1411, %v1433
        %v1442 = vmul.f32 %v1416, %v1434
        %v1443 = vmul.f32 %v1419, %v1435
        %v1444 = vmul.f32 %v1424, %v1436
        %v1445 = vmul.f32 %v1427, %v1437
        %v1446 = vmul.f32 %v1438, 0.044715
        %v1447 = vmul.f32 %v1439, 0.044715
        %v1448 = vmul.f32 %v1440, 0.044715
        %v1449 = vmul.f32 %v1441, 0.044715
        %v1450 = vmul.f32 %v1442, 0.044715
        %v1451 = vmul.f32 %v1443, 0.044715
        %v1452 = vmul.f32 %v1444, 0.044715
        %v1453 = vmul.f32 %v1445, 0.044715
        %v1454 = vadd.f32 %v1400, %v1446
        %v1455 = vadd.f32 %v1403, %v1447
        %v1456 = vadd.f32 %v1408, %v1448
        %v1457 = vadd.f32 %v1411, %v1449
        %v1458 = vadd.f32 %v1416, %v1450
        %v1459 = vadd.f32 %v1419, %v1451
        %v1460 = vadd.f32 %v1424, %v1452
        %v1461 = vadd.f32 %v1427, %v1453
        %v1462 = vmul.f32 %v1454, 0.7978846
        %v1463 = vmul.f32 %v1455, 0.7978846
        %v1464 = vmul.f32 %v1456, 0.7978846
        %v1465 = vmul.f32 %v1457, 0.7978846
        %v1466 = vmul.f32 %v1458, 0.7978846
        %v1467 = vmul.f32 %v1459, 0.7978846
        %v1468 = vmul.f32 %v1460, 0.7978846
        %v1469 = vmul.f32 %v1461, 0.7978846
        %v1470 = vtanh.pop %v1462
        %v1471 = vtanh.pop %v1463
        %v1472 = vtanh.pop %v1464
        %v1473 = vtanh.pop %v1465
        %v1474 = vtanh.pop %v1466
        %v1475 = vtanh.pop %v1467
        %v1476 = vtanh.pop %v1468
        %v1477 = vtanh.pop %v1469
        %v1478 = vadd.f32 %v1470, 1.0
        %v1479 = vadd.f32 %v1471, 1.0
        %v1480 = vadd.f32 %v1472, 1.0
        %v1481 = vadd.f32 %v1473, 1.0
        %v1482 = vadd.f32 %v1474, 1.0
        %v1483 = vadd.f32 %v1475, 1.0
        %v1484 = vadd.f32 %v1476, 1.0
        %v1485 = vadd.f32 %v1477, 1.0
        %v1486 = vmul.f32 %v1478, 0.5
        %v1487 = vmul.f32 %v1479, 0.5
        %v1488 = vmul.f32 %v1480, 0.5
        %v1489 = vmul.f32 %v1481, 0.5
        %v1490 = vmul.f32 %v1482, 0.5
        %v1491 = vmul.f32 %v1483, 0.5
        %v1492 = vmul.f32 %v1484, 0.5
        %v1493 = vmul.f32 %v1485, 0.5
        %v1494 = vmul.f32 %v1400, %v1486
        %v1495 = vmul.f32 %v1403, %v1487
        %v1496 = vmul.f32 %v1408, %v1488
        %v1497 = vmul.f32 %v1411, %v1489
        %v1498 = vmul.f32 %v1416, %v1490
        %v1499 = vmul.f32 %v1419, %v1491
        %v1500 = vmul.f32 %v1424, %v1492
        %v1501 = vmul.f32 %v1427, %v1493
        %v1502 = vpack.c.bf16 %v1495, %v1494
        %v1503 = vpack.c.bf16 %v1497, %v1496
        %v1504 = vpack.c.bf16 %v1499, %v1498
        %v1505 = vpack.c.bf16 %v1501, %v1500
        %v1507 = vlaneseq
        %v1508 = vshrl.u32 %v1507, 7
        %v1509 = vsub.s32 0, %v1508
        %v1510 = vrot.slane %v1066, %v1509
        %v1528 = vunpack.c.l.b16 %v1050
        %v1529 = vunpack.c.l.b16 %v1051
        %v1530 = vunpack.c.l.b16 %v1052
        %v1531 = vunpack.c.l.b16 %v1053
        %v1532 = vunpack.c.l.b16 %v1054
        %v1533 = vunpack.c.l.b16 %v1055
        %v1534 = vunpack.c.l.b16 %v1056
        %v1535 = vunpack.c.l.b16 %v1057
        %v1536 = vunpack.c.l.b16 %v1058
        %v1537 = vunpack.c.l.b16 %v1059
        %v1538 = vunpack.c.l.b16 %v1060
        %v1539 = vunpack.c.l.b16 %v1061
        %v1540 = vunpack.c.l.b16 %v1062
        %v1541 = vunpack.c.l.b16 %v1063
        %v1542 = vunpack.c.l.b16 %v1064
        %v1543 = vunpack.c.l.b16 %v1065
        %v1544 = vpack.c.b16 %v1529, %v1528
        %v1545 = vpack.c.b16 %v1531, %v1530
        %v1546 = vpack.c.b16 %v1533, %v1532
        %v1547 = vpack.c.b16 %v1535, %v1534
        %v1548 = vpack.c.b16 %v1537, %v1536
        %v1549 = vpack.c.b16 %v1539, %v1538
        %v1550 = vpack.c.b16 %v1541, %v1540
        %v1551 = vpack.c.b16 %v1543, %v1542
        %1560 = vmatprep.subr.bf16.mxu0 0
        %1561 = vmatpush1.bf16.msra.mxu0 %v1544
        %1562 = vmatprep.subr.bf16.mxu0 0
        %1563 = vmatpush1.bf16.msra.mxu0 %v1545
        %1564 = vmatprep.subr.bf16.mxu0 0
        %1565 = vmatpush1.bf16.msra.mxu0 %v1546
        %1566 = vmatprep.subr.bf16.mxu0 0
        %1567 = vmatpush1.bf16.msra.mxu0 %v1547
        %1568 = vmatprep.subr.bf16.mxu0 0
        %1569 = vmatpush1.bf16.msra.mxu0 %v1548
        %1570 = vmatprep.subr.bf16.mxu0 0
        %1571 = vmatpush1.bf16.msra.mxu0 %v1549
        %1572 = vmatprep.subr.bf16.mxu0 0
        %1573 = vmatpush1.bf16.msra.mxu0 %v1550
        %1574 = vmatprep.subr.bf16.mxu0 0
        %1575 = vmatpush1.bf16.msra.mxu0 %v1551
        %1576 = vmatprep.subr.bf16.mxu0 0
        %1577 = vmatpush1.bf16.msra.mxu0 0
        %1578 = vmatprep.subr.bf16.mxu0 0
        %1579 = vmatpush1.bf16.msra.mxu0 0
        %1580 = vmatprep.subr.bf16.mxu0 0
        %1581 = vmatpush1.bf16.msra.mxu0 0
        %1582 = vmatprep.subr.bf16.mxu0 0
        %1583 = vmatpush1.bf16.msra.mxu0 0
        %1584 = vmatprep.subr.bf16.mxu0 0
        %1585 = vmatpush1.bf16.msra.mxu0 0
        %1586 = vmatprep.subr.bf16.mxu0 0
        %1587 = vmatpush1.bf16.msra.mxu0 0
        %1588 = vmatprep.subr.bf16.mxu0 0
        %1589 = vmatpush1.bf16.msra.mxu0 0
        %1590 = vmatprep.subr.bf16.mxu0 0
        %1591 = vmatpush1.bf16.msra.mxu0 0
        %1592 = vmatprep.mubr.bf16.mxu0 0
        %1593 = vmatmul.mubr.bf16.gmra.mrb[0].mxu0 %v1502
        %v1594 = vpop.f32.mrb[0].mxu0
        %v1595 = vadd.f32 %v1510, %v1594
        %v1596 = vpop.f32.mrb[0].mxu0
        %v1597 = vpop.f32.mrb[0].mxu0
        %v1598 = vadd.f32 %v1510, %v1597
        %v1599 = vpop.f32.mrb[0].mxu0
        %1600 = vmatprep.mubr.bf16.mxu0 0
        %1601 = vmatmul.mubr.bf16.gmra.mrb[0].mxu0 %v1503
        %v1602 = vpop.f32.mrb[0].mxu0
        %v1603 = vadd.f32 %v1510, %v1602
        %v1604 = vpop.f32.mrb[0].mxu0
        %v1605 = vpop.f32.mrb[0].mxu0
        %v1606 = vadd.f32 %v1510, %v1605
        %v1607 = vpop.f32.mrb[0].mxu0
        %1608 = vmatprep.mubr.bf16.mxu0 0
        %1609 = vmatmul.mubr.bf16.gmra.mrb[0].mxu0 %v1504
        %v1610 = vpop.f32.mrb[0].mxu0
        %v1611 = vadd.f32 %v1510, %v1610
        %v1612 = vpop.f32.mrb[0].mxu0
        %v1613 = vpop.f32.mrb[0].mxu0
        %v1614 = vadd.f32 %v1510, %v1613
        %v1615 = vpop.f32.mrb[0].mxu0
        %1616 = vmatprep.mubr.bf16.mxu0 0
        %1617 = vmatmul.mubr.bf16.gmra.mrb[0].mxu0 %v1505
        %v1618 = vpop.f32.mrb[0].mxu0
        %v1619 = vadd.f32 %v1510, %v1618
        %v1620 = vpop.f32.mrb[0].mxu0
        %v1621 = vpop.f32.mrb[0].mxu0
        %v1622 = vadd.f32 %v1510, %v1621
        %v1623 = vpop.f32.mrb[0].mxu0
        %1624 = vdwg.mxu0
        %v1625 = vmul.f32 %v1595, %v1595
        %v1626 = vmul.f32 %v1598, %v1598
        %v1627 = vmul.f32 %v1603, %v1603
        %v1628 = vmul.f32 %v1606, %v1606
        %v1629 = vmul.f32 %v1611, %v1611
        %v1630 = vmul.f32 %v1614, %v1614
        %v1631 = vmul.f32 %v1619, %v1619
        %v1632 = vmul.f32 %v1622, %v1622
        %v1633 = vmul.f32 %v1595, %v1625
        %v1634 = vmul.f32 %v1598, %v1626
        %v1635 = vmul.f32 %v1603, %v1627
        %v1636 = vmul.f32 %v1606, %v1628
        %v1637 = vmul.f32 %v1611, %v1629
        %v1638 = vmul.f32 %v1614, %v1630
        %v1639 = vmul.f32 %v1619, %v1631
        %v1640 = vmul.f32 %v1622, %v1632
        %v1641 = vmul.f32 %v1633, 0.044715
        %v1642 = vmul.f32 %v1634, 0.044715
        %v1643 = vmul.f32 %v1635, 0.044715
        %v1644 = vmul.f32 %v1636, 0.044715
        %v1645 = vmul.f32 %v1637, 0.044715
        %v1646 = vmul.f32 %v1638, 0.044715
        %v1647 = vmul.f32 %v1639, 0.044715
        %v1648 = vmul.f32 %v1640, 0.044715
        %v1649 = vadd.f32 %v1595, %v1641
        %v1650 = vadd.f32 %v1598, %v1642
        %v1651 = vadd.f32 %v1603, %v1643
        %v1652 = vadd.f32 %v1606, %v1644
        %v1653 = vadd.f32 %v1611, %v1645
        %v1654 = vadd.f32 %v1614, %v1646
        %v1655 = vadd.f32 %v1619, %v1647
        %v1656 = vadd.f32 %v1622, %v1648
        %v1657 = vmul.f32 %v1649, 0.7978846
        %v1658 = vmul.f32 %v1650, 0.7978846
        %v1659 = vmul.f32 %v1651, 0.7978846
        %v1660 = vmul.f32 %v1652, 0.7978846
        %v1661 = vmul.f32 %v1653, 0.7978846
        %v1662 = vmul.f32 %v1654, 0.7978846
        %v1663 = vmul.f32 %v1655, 0.7978846
        %v1664 = vmul.f32 %v1656, 0.7978846
        %v1665 = vtanh.pop %v1657
        %v1666 = vtanh.pop %v1658
        %v1667 = vtanh.pop %v1659
        %v1668 = vtanh.pop %v1660
        %v1669 = vtanh.pop %v1661
        %v1670 = vtanh.pop %v1662
        %v1671 = vtanh.pop %v1663
        %v1672 = vtanh.pop %v1664
        %v1673 = vadd.f32 %v1665, 1.0
        %v1674 = vadd.f32 %v1666, 1.0
        %v1675 = vadd.f32 %v1667, 1.0
        %v1676 = vadd.f32 %v1668, 1.0
        %v1677 = vadd.f32 %v1669, 1.0
        %v1678 = vadd.f32 %v1670, 1.0
        %v1679 = vadd.f32 %v1671, 1.0
        %v1680 = vadd.f32 %v1672, 1.0
        %v1681 = vmul.f32 %v1673, 0.5
        %v1682 = vmul.f32 %v1674, 0.5
        %v1683 = vmul.f32 %v1675, 0.5
        %v1684 = vmul.f32 %v1676, 0.5
        %v1685 = vmul.f32 %v1677, 0.5
        %v1686 = vmul.f32 %v1678, 0.5
        %v1687 = vmul.f32 %v1679, 0.5
        %v1688 = vmul.f32 %v1680, 0.5
        %v1689 = vmul.f32 %v1595, %v1681
        %v1690 = vmul.f32 %v1598, %v1682
        %v1691 = vmul.f32 %v1603, %v1683
        %v1692 = vmul.f32 %v1606, %v1684
        %v1693 = vmul.f32 %v1611, %v1685
        %v1694 = vmul.f32 %v1614, %v1686
        %v1695 = vmul.f32 %v1619, %v1687
        %v1696 = vmul.f32 %v1622, %v1688
        %v1697 = vpack.c.bf16 %v1690, %v1689
        %v1698 = vpack.c.bf16 %v1692, %v1691
        %v1699 = vpack.c.bf16 %v1694, %v1693
        %v1700 = vpack.c.bf16 %v1696, %v1695
        %v1701 = vld [vmem:[#allocation11] sm:$0xf]
        %v1702 = vld [vmem:[#allocation11 + $0x4] sm:$0xf]
        %v1703 = vld [vmem:[#allocation11 + $0x8] sm:$0xf]
        %v1704 = vld [vmem:[#allocation11 + $0xc] sm:$0xf]
        %v1705 = vld [vmem:[#allocation11 + $0x10] sm:$0xf]
        %v1706 = vld [vmem:[#allocation11 + $0x14] sm:$0xf]
        %v1707 = vld [vmem:[#allocation11 + $0x18] sm:$0xf]
        %v1708 = vld [vmem:[#allocation11 + $0x1c] sm:$0xf]
        %v1709 = vld [vmem:[#allocation11 + $0x20] sm:$0xf]
        %v1710 = vld [vmem:[#allocation11 + $0x24] sm:$0xf]
        %v1711 = vld [vmem:[#allocation11 + $0x28] sm:$0xf]
        %v1712 = vld [vmem:[#allocation11 + $0x2c] sm:$0xf]
        %v1713 = vld [vmem:[#allocation11 + $0x30] sm:$0xf]
        %v1714 = vld [vmem:[#allocation11 + $0x34] sm:$0xf]
        %v1715 = vld [vmem:[#allocation11 + $0x38] sm:$0xf]
        %v1716 = vld [vmem:[#allocation11 + $0x3c] sm:$0xf]
        %v1717 = vld [vmem:[%s11] sm:$0x1]
        %v1719 = vlaneseq
        %v1720 = vshrl.u32 %v1719, 7
        %v1721 = vsub.s32 0, %v1720
        %v1722 = vrot.slane %v1717, %v1721
        %v1740 = vunpack.c.l.b16 %v1701
        %v1741 = vunpack.c.l.b16 %v1702
        %v1742 = vunpack.c.l.b16 %v1703
        %v1743 = vunpack.c.l.b16 %v1704
        %v1744 = vunpack.c.l.b16 %v1705
        %v1745 = vunpack.c.l.b16 %v1706
        %v1746 = vunpack.c.l.b16 %v1707
        %v1747 = vunpack.c.l.b16 %v1708
        %v1748 = vunpack.c.l.b16 %v1709
        %v1749 = vunpack.c.l.b16 %v1710
        %v1750 = vunpack.c.l.b16 %v1711
        %v1751 = vunpack.c.l.b16 %v1712
        %v1752 = vunpack.c.l.b16 %v1713
        %v1753 = vunpack.c.l.b16 %v1714
        %v1754 = vunpack.c.l.b16 %v1715
        %v1755 = vunpack.c.l.b16 %v1716
        %v1756 = vpack.c.b16 %v1741, %v1740
        %v1757 = vpack.c.b16 %v1743, %v1742
        %v1758 = vpack.c.b16 %v1745, %v1744
        %v1759 = vpack.c.b16 %v1747, %v1746
        %v1760 = vpack.c.b16 %v1749, %v1748
        %v1761 = vpack.c.b16 %v1751, %v1750
        %v1762 = vpack.c.b16 %v1753, %v1752
        %v1763 = vpack.c.b16 %v1755, %v1754
        %1772 = vmatprep.subr.bf16.mxu0 0
        %1773 = vmatpush1.bf16.msra.mxu0 %v1756
        %1774 = vmatprep.subr.bf16.mxu0 0
        %1775 = vmatpush1.bf16.msra.mxu0 %v1757
        %1776 = vmatprep.subr.bf16.mxu0 0
        %1777 = vmatpush1.bf16.msra.mxu0 %v1758
        %1778 = vmatprep.subr.bf16.mxu0 0
        %1779 = vmatpush1.bf16.msra.mxu0 %v1759
        %1780 = vmatprep.subr.bf16.mxu0 0
        %1781 = vmatpush1.bf16.msra.mxu0 %v1760
        %1782 = vmatprep.subr.bf16.mxu0 0
        %1783 = vmatpush1.bf16.msra.mxu0 %v1761
        %1784 = vmatprep.subr.bf16.mxu0 0
        %1785 = vmatpush1.bf16.msra.mxu0 %v1762
        %1786 = vmatprep.subr.bf16.mxu0 0
        %1787 = vmatpush1.bf16.msra.mxu0 %v1763
        %1788 = vmatprep.subr.bf16.mxu0 0
        %1789 = vmatpush1.bf16.msra.mxu0 0
        %1790 = vmatprep.subr.bf16.mxu0 0
        %1791 = vmatpush1.bf16.msra.mxu0 0
        %1792 = vmatprep.subr.bf16.mxu0 0
        %1793 = vmatpush1.bf16.msra.mxu0 0
        %1794 = vmatprep.subr.bf16.mxu0 0
        %1795 = vmatpush1.bf16.msra.mxu0 0
        %1796 = vmatprep.subr.bf16.mxu0 0
        %1797 = vmatpush1.bf16.msra.mxu0 0
        %1798 = vmatprep.subr.bf16.mxu0 0
        %1799 = vmatpush1.bf16.msra.mxu0 0
        %1800 = vmatprep.subr.bf16.mxu0 0
        %1801 = vmatpush1.bf16.msra.mxu0 0
        %1802 = vmatprep.subr.bf16.mxu0 0
        %1803 = vmatpush1.bf16.msra.mxu0 0
        %1804 = vmatprep.mubr.bf16.mxu0 0
        %1805 = vmatmul.mubr.bf16.gmra.mrb[0].mxu0 %v1697
        %v1806 = vpop.f32.mrb[0].mxu0
        %v1807 = vadd.f32 %v1722, %v1806
        %v1808 = vpop.f32.mrb[0].mxu0
        %v1809 = vpop.f32.mrb[0].mxu0
        %v1810 = vadd.f32 %v1722, %v1809
        %v1811 = vpop.f32.mrb[0].mxu0
        %1812 = vmatprep.mubr.bf16.mxu0 0
        %1813 = vmatmul.mubr.bf16.gmra.mrb[0].mxu0 %v1698
        %v1814 = vpop.f32.mrb[0].mxu0
        %v1815 = vadd.f32 %v1722, %v1814
        %v1816 = vpop.f32.mrb[0].mxu0
        %v1817 = vpop.f32.mrb[0].mxu0
        %v1818 = vadd.f32 %v1722, %v1817
        %v1819 = vpop.f32.mrb[0].mxu0
        %1820 = vmatprep.mubr.bf16.mxu0 0
        %1821 = vmatmul.mubr.bf16.gmra.mrb[0].mxu0 %v1699
        %v1822 = vpop.f32.mrb[0].mxu0
        %v1823 = vadd.f32 %v1722, %v1822
        %v1824 = vpop.f32.mrb[0].mxu0
        %v1825 = vpop.f32.mrb[0].mxu0
        %v1826 = vadd.f32 %v1722, %v1825
        %v1827 = vpop.f32.mrb[0].mxu0
        %1828 = vmatprep.mubr.bf16.mxu0 0
        %1829 = vmatmul.mubr.bf16.gmra.mrb[0].mxu0 %v1700
        %v1830 = vpop.f32.mrb[0].mxu0
        %v1831 = vadd.f32 %v1722, %v1830
        %v1832 = vpop.f32.mrb[0].mxu0
        %v1833 = vpop.f32.mrb[0].mxu0
        %v1834 = vadd.f32 %v1722, %v1833
        %v1835 = vpop.f32.mrb[0].mxu0
        %1836 = vdwg.mxu0
        %v1837 = vmul.f32 %v1807, %v1807
        %v1838 = vmul.f32 %v1810, %v1810
        %v1839 = vmul.f32 %v1815, %v1815
        %v1840 = vmul.f32 %v1818, %v1818
        %v1841 = vmul.f32 %v1823, %v1823
        %v1842 = vmul.f32 %v1826, %v1826
        %v1843 = vmul.f32 %v1831, %v1831
        %v1844 = vmul.f32 %v1834, %v1834
        %v1845 = vmul.f32 %v1807, %v1837
        %v1846 = vmul.f32 %v1810, %v1838
        %v1847 = vmul.f32 %v1815, %v1839
        %v1848 = vmul.f32 %v1818, %v1840
        %v1849 = vmul.f32 %v1823, %v1841
        %v1850 = vmul.f32 %v1826, %v1842
        %v1851 = vmul.f32 %v1831, %v1843
        %v1852 = vmul.f32 %v1834, %v1844
        %v1853 = vmul.f32 %v1845, 0.044715
        %v1854 = vmul.f32 %v1846, 0.044715
        %v1855 = vmul.f32 %v1847, 0.044715
        %v1856 = vmul.f32 %v1848, 0.044715
        %v1857 = vmul.f32 %v1849, 0.044715
        %v1858 = vmul.f32 %v1850, 0.044715
        %v1859 = vmul.f32 %v1851, 0.044715
        %v1860 = vmul.f32 %v1852, 0.044715
        %v1861 = vadd.f32 %v1807, %v1853
        %v1862 = vadd.f32 %v1810, %v1854
        %v1863 = vadd.f32 %v1815, %v1855
        %v1864 = vadd.f32 %v1818, %v1856
        %v1865 = vadd.f32 %v1823, %v1857
        %v1866 = vadd.f32 %v1826, %v1858
        %v1867 = vadd.f32 %v1831, %v1859
        %v1868 = vadd.f32 %v1834, %v1860
        %v1869 = vmul.f32 %v1861, 0.7978846
        %v1870 = vmul.f32 %v1862, 0.7978846
        %v1871 = vmul.f32 %v1863, 0.7978846
        %v1872 = vmul.f32 %v1864, 0.7978846
        %v1873 = vmul.f32 %v1865, 0.7978846
        %v1874 = vmul.f32 %v1866, 0.7978846
        %v1875 = vmul.f32 %v1867, 0.7978846
        %v1876 = vmul.f32 %v1868, 0.7978846
        %v1877 = vtanh.pop %v1869
        %v1878 = vtanh.pop %v1870
        %v1879 = vtanh.pop %v1871
        %v1880 = vtanh.pop %v1872
        %v1881 = vtanh.pop %v1873
        %v1882 = vtanh.pop %v1874
        %v1883 = vtanh.pop %v1875
        %v1884 = vtanh.pop %v1876
        %v1885 = vadd.f32 %v1877, 1.0
        %v1886 = vadd.f32 %v1878, 1.0
        %v1887 = vadd.f32 %v1879, 1.0
        %v1888 = vadd.f32 %v1880, 1.0
        %v1889 = vadd.f32 %v1881, 1.0
        %v1890 = vadd.f32 %v1882, 1.0
        %v1891 = vadd.f32 %v1883, 1.0
        %v1892 = vadd.f32 %v1884, 1.0
        %v1893 = vmul.f32 %v1885, 0.5
        %v1894 = vmul.f32 %v1886, 0.5
        %v1895 = vmul.f32 %v1887, 0.5
        %v1896 = vmul.f32 %v1888, 0.5
        %v1897 = vmul.f32 %v1889, 0.5
        %v1898 = vmul.f32 %v1890, 0.5
        %v1899 = vmul.f32 %v1891, 0.5
        %v1900 = vmul.f32 %v1892, 0.5
        %v1901 = vmul.f32 %v1807, %v1893
        %v1902 = vmul.f32 %v1810, %v1894
        %v1903 = vmul.f32 %v1815, %v1895
        %v1904 = vmul.f32 %v1818, %v1896
        %v1905 = vmul.f32 %v1823, %v1897
        %v1906 = vmul.f32 %v1826, %v1898
        %v1907 = vmul.f32 %v1831, %v1899
        %v1908 = vmul.f32 %v1834, %v1900
        %v1909 = vmul.f32 %v1901, %v560
        %v1910 = vmul.f32 %v1902, %v562
        %v1911 = vmul.f32 %v1903, %v564
        %v1912 = vmul.f32 %v1904, %v566
        %v1913 = vmul.f32 %v1905, %v561
        %v1914 = vmul.f32 %v1906, %v563
        %v1915 = vmul.f32 %v1907, %v565
        %v1916 = vmul.f32 %v1908, %v567
        %v1917 = vadd.f32 %v1909, %v1913
        %v1918 = vadd.f32 %v1910, %v1914
        %v1919 = vadd.f32 %v1911, %v1915
        %v1920 = vadd.f32 %v1912, %v1916
        %1921 = vrot.lane.b32.xlu0 %v1917, 32
        %v1922 = vpop.permute.xlu0 %1921
        %1923 = vrot.lane.b32.xlu0 %v1918, 32
        %v1924 = vpop.permute.xlu0 %1923
        %1925 = vrot.lane.b32.xlu0 %v1919, 32
        %v1926 = vpop.permute.xlu0 %1925
        %1927 = vrot.lane.b32.xlu0 %v1920, 32
        %v1928 = vpop.permute.xlu0 %1927
        %v1929 = vadd.f32 %v1917, %v1922
        %v1930 = vadd.f32 %v1918, %v1924
        %v1931 = vadd.f32 %v1919, %v1926
        %v1932 = vadd.f32 %v1920, %v1928
        %1933 = vrot.lane.b32.xlu0 %v1929, 64
        %v1934 = vpop.permute.xlu0 %1933
        %1935 = vrot.lane.b32.xlu0 %v1930, 64
        %v1936 = vpop.permute.xlu0 %1935
        %1937 = vrot.lane.b32.xlu0 %v1931, 64
        %v1938 = vpop.permute.xlu0 %1937
        %1939 = vrot.lane.b32.xlu0 %v1932, 64
        %v1940 = vpop.permute.xlu0 %1939
        %v1941 = vadd.f32 %v1929, %v1934
        %v1942 = vadd.f32 %v1930, %v1936
        %v1943 = vadd.f32 %v1931, %v1938
        %v1944 = vadd.f32 %v1932, %v1940
        %1945 = vst [vmem:[%s555] sm:$0xff] %v1941
        %1946 = vst [vmem:[%s555 + $0x8] sm:$0xff] %v1942
        %1947 = vst [vmem:[%s555 + $0x10] sm:$0xff] %v1943
        %1948 = vst [vmem:[%s555 + $0x18] sm:$0xff] %v1944
        %s1949 = sand.u32 %s304, 1
        %s1950 = scalar_lea.sflag [#allocation4], %s1949
        %s1951 = sand.u32 %s304, 1
        %s1952 = smul.addr %s1951, 32
        %s1953 = scalar_lea.vmem [#allocation13], %s1952
        // Predicated region
        $region93: #{tpu_custom_call.1} parent=67 // pred_check
          %p1954 = pneg %p314
        $region94: #{tpu_custom_call.1} parent=67 // pred_check_branch
          %1956 = sbr.rel (%p1954) target = $region96
        $region95: #{tpu_custom_call.1} parent=67 // pred_region
          %s1957 = smul.u32 4, %s34
          %s1959 = ssub.s32 512, 512
          %1960 = vsyncadd %s1950, %s1959
          %s1961 = smul.addr %s1957, 128
          %s1962 = scalar_lea.hbm %s12, %s1961
          %s1963 = sshll.u32 %s1953, 4
          %s1964 = int_to_ptr.vmem [resolvable:$true] %s1963
          %1969 = dma.vmem_to_hbm [thread:$0]  %s1964, 512, %s1962, %s1950, 128, 128, 8
        $region96: #{tpu_custom_call.1} parent=67 // pred_fallthru
          _
      $region68: #{tpu_custom_call.1} parent=5 // pred_fallthru
        _
      %p1970 = scmp.le.s32.totalorder 2, %s29
      // Predicated region
      $region97: #{tpu_custom_call.1} parent=5 // pred_check
        %p1971 = pneg %p1970
      $region98: #{tpu_custom_call.1} parent=5 // pred_check_branch
        %1973 = sbr.rel (%p1971) target = $region100
      $region99: #{tpu_custom_call.1} parent=5 // pred_region
        %s1974 = ssub.s32 %s29, 2
        // Predicated region
        $region101: #{tpu_custom_call.1} parent=99 // pred_check
          %p1975 = pneg %p320
        $region102: #{tpu_custom_call.1} parent=99 // pred_check_branch
          %1977 = sbr.rel (%p1975) target = $region104
        $region103: #{tpu_custom_call.1} parent=99 // pred_region
          %s1978 = sand.u32 %s305, 1
          %s1979 = scalar_lea.sflag [#allocation4], %s1978
          %s1980 = sand.u32 %s305, 1
          %s1981 = smul.addr %s1980, 32
          %s1982 = scalar_lea.vmem [#allocation13], %s1981
          %1983 = dma.done %s1979, 512
        $region104: #{tpu_custom_call.1} parent=99 // pred_fallthru
          _
      $region100: #{tpu_custom_call.1} parent=5 // pred_fallthru
        _
    $region6: #{tpu_custom_call.1} parent=1 // loop_footer
      %s33 = sadd.s32 1, %s29
    $region7: #{tpu_custom_call.1} parent=1 // loop_footer_branch
      %28 = sbr.rel target = $region3
    $region8: #{tpu_custom_call.1} parent=1 // loop_exit
      _
    %1984 = vsyncpa [#allocation3], 1
    %s1985 = scalar_lea.sflag [#allocation3], 1
    %1986 = vsyncpa %s1985, 1
    %1987 = vsyncpa [#allocation6], 1
    %s1988 = scalar_lea.sflag [#allocation6], 1
    %1989 = vsyncpa %s1988, 1
    %1990 = vsyncpa [#allocation9], 1
    %1991 = vsyncpa [#allocation12], 1
    %1992 = vsyncpa [#allocation4], 1
    %s1993 = scalar_lea.sflag [#allocation4], 1
    %1994 = vsyncpa %s1993, 1

</llo_original>
